<compile_context>
chip_gen: v7x
topology: tpu7x:2x2x1
jax: 0.10.0
libtpu: 0.0.40
codegen_flags: <defaults>
</compile_context>

<pallas_src>
import math

import jax
import jax.numpy as jnp
from jax.experimental import pallas as pl
from jax.experimental.pallas import tpu as pltpu


def _vmem_capacity_bytes() -> int:
    """Per-TensorCore VMEM capacity; conservative fallback if the query fails."""
    try:
        info = pltpu.get_tpu_info()
        cap = getattr(info, "vmem_capacity_bytes", None)
        if cap:
            return int(cap)
    except Exception:
        pass
    return 64 * 1024 * 1024  # v7x per-core VMEM (smallest of the targets)


def _make_fused_attention_kernel(*, scale, head_num, value_head_dim, has_mask,
                                 matmul_dtype, attn_dtype):
    H, Dv = head_num, value_head_dim

    def kernel(*refs):
        it = iter(refs)
        q_ref = next(it)                                  # (1, H, tq, Dh)  bf16
        k_ref = next(it)                                  # (1, H, Dh, Lk)  bf16 (lane-dense Lk)
        v_ref = next(it)                                  # (1, H, Lk, Dv)  bf16
        mask_ref = next(it) if has_mask else None         # (1, tq|1, Lk) int8
        w_ref = next(it)                                  # (vdim, vdim) bf16 (= W.T)
        b_ref = next(it)                                  # (1, vdim) f32
        attn_ref = next(it)                               # (1, H, tq, Lk) attn_dtype
        out_ref = next(it)                                # (1, tq, vdim) f32
        ctx_ref = next(it)                                # VMEM scratch (tq, vdim) f32

        neg_inf = jnp.float32(-jnp.inf)
        q_scale = jnp.asarray(scale, dtype=matmul_dtype)
        if has_mask:
            valid = mask_ref[0] != 0                      # hoisted out of the head loop

        # Static head loop: per-head temporaries stay small; ctx accumulates via the
        # scratch, so there is no growing f32 accumulator live across heads.
        for h in range(H):
            qh = q_ref[0, h] * q_scale                    # scale on q: tq*Dh muls
            kh = k_ref[0, h]                              # (Dh, Lk)
            s = jnp.dot(qh, kh, preferred_element_type=jnp.float32)   # (tq, Lk) f32
            if has_mask:
                s = jnp.where(valid, s, neg_inf)

            # Exact softmax over the full key axis, in f32. Fully-masked rows give
            # NaN, exactly like torch's softmax over an all -inf row.
            m = jnp.max(s, axis=-1, keepdims=True)
            e = jnp.exp(s - m)
            denom = jnp.sum(e, axis=-1, keepdims=True)
            p = e * pl.reciprocal(denom, approx=False)    # exact: attn is an output
            attn_ref[0, h] = p.astype(attn_dtype)

            vh = v_ref[0, h]                              # (Lk, Dv)
            ctx_ref[:, h * Dv:(h + 1) * Dv] = jnp.dot(
                p.astype(matmul_dtype), vh, preferred_element_type=jnp.float32)

        # Fused output projection: ONE full-depth (K = value_dim) bf16 matmul.
        y = jnp.dot(ctx_ref[...].astype(matmul_dtype), w_ref[...],
                    preferred_element_type=jnp.float32)
        out_ref[0] = y + b_ref[...]                       # bias broadcast (1,vd)->(tq,vd)

    return kernel


class MultiHeadAttentionPallas:
    """Pallas TPU implementation of the torch MultiHeadAttention forward pass."""

    def __init__(self, dim, head_num, dropout=0.1, value_dim=None, *, key,
                 matmul_dtype=jnp.bfloat16, attn_dtype=jnp.bfloat16):
        self.dim = dim
        self.head_num = head_num
        self.head_kv_dim = dim // head_num
        assert self.head_kv_dim * self.head_num == self.dim
        self.value_dim = value_dim if value_dim is not None else dim
        assert self.value_dim % head_num == 0
        self.head_v_dim = self.value_dim // head_num
        self.scale = 1.0 / math.sqrt(self.head_kv_dim)
        # Documented precision choices: Q/K/V and the projection run in bf16 on the
        # MXU (softmax + accumulation stay f32); the returned attention map is bf16
        # by default (dominant HBM writeback halved). Use float32 for exact parity.
        self.matmul_dtype = matmul_dtype
        self.attn_dtype = attn_dtype

        # output_projection_layer = nn.Linear(value_dim, value_dim), deterministic init
        kw, kb = jax.random.split(key)
        bound = 1.0 / math.sqrt(self.value_dim)
        self.proj_w = jax.random.uniform(
            kw, (self.value_dim, self.value_dim), jnp.float32, -bound, bound)
        self.proj_b = jax.random.uniform(
            kb, (1, self.value_dim), jnp.float32, -bound, bound)
        # Pre-transposed + pre-cast once at init: MXU sees bf16 weights, f32 accum.
        self.proj_w_t = jnp.transpose(self.proj_w).astype(matmul_dtype)

        # TODO(synk): nn.Dropout(0.1) is treated as identity (eval-mode semantics);
        # the torch RNG dropout stream has no meaningful Pallas equivalent.

    def __call__(self, *, query, key, value, key_value_mask=None, key_padding_mask=None):
        Lq, B, _ = query.shape
        Lk = key.shape[0]
        H, Dh, Dv = self.head_num, self.head_kv_dim, self.head_v_dim
        vdim = self.value_dim
        cdt = self.matmul_dtype
        adt = self.attn_dtype

        # Cast BEFORE transposing so the wrapper-side relayout moves bf16, not f32.
        # Q: [B,H,Lq,Dh]; K lane-dense: [B,H,Dh,Lk]; V: [B,H,Lk,Dv].
        q = jnp.transpose(query.astype(cdt).reshape(Lq, B, H, Dh), (1, 2, 0, 3))
        k = jnp.transpose(key.astype(cdt).reshape(Lk, B, H, Dh), (1, 2, 3, 0))
        v = jnp.transpose(value.astype(cdt).reshape(Lk, B, H, Dv), (1, 2, 0, 3))
        # TODO(synk): blocking directly off the original [L,B,dim] layout (index_map +
        # static in-kernel head slices) would remove these transposes entirely.

        has_kv_mask = key_value_mask is not None
        has_pad_mask = key_padding_mask is not None
        has_mask = has_kv_mask or has_pad_mask

        # ---- generation-aware q-tile / VMEM budgeting -----------------------------
        cap = _vmem_capacity_bytes()
        budget = max(cap - (16 << 20), cap // 2)
        msize = jnp.dtype(cdt).itemsize
        asize = jnp.dtype(adt).itemsize

        def block_bytes(tq):
            n = 2 * H * tq * Dh * msize            # q block (double-buffered)
            n += 2 * H * Dh * Lk * msize           # K block (resident per batch)
            n += 2 * H * Lk * Dv * msize           # V block
            if has_kv_mask:
                n += 2 * tq * Lk                   # combined int8 mask
            elif has_pad_mask:
                n += 2 * Lk
            n += 2 * (vdim * vdim * msize + vdim * 4)   # W^T + bias
            n += 2 * H * tq * Lk * asize           # attn output block
            n += 2 * tq * vdim * 4                 # y output block
            n += tq * vdim * 4                     # ctx scratch
            n += 3 * tq * Lk * 4                   # per-head f32 temporaries (s/e/p)
            return n

        # Largest q tile that divides Lq and fits the per-chip VMEM budget
        # (>= 256 fills the v6e/v7x 256-row MXU; floor of 16 = bf16 min sublane tile).
        candidates = [t for t in (512, 256, 128, 64, 32, 16) if Lq % t == 0]
        if not candidates:
            candidates = [Lq]                      # small / ragged Lq: one full-extent tile
        tq = candidates[-1]
        for t in candidates:                       # descending
            if block_bytes(t) <= budget:
                tq = t
                break
        # TODO(synk): if even the smallest q tile overflows the budget (huge H*Lk on
        # v7x's 64 MiB), fall back to a heads-in-grid variant ((B, H, q) grid with
        # (1, 1, ...) K/V blocks and a pl.when-accumulated y scratch).
        nq = Lq // tq
        vmem_limit = int(min(budget, max(2 * block_bytes(tq), 32 << 20)))

        # ---- inputs / specs --------------------------------------------------------
        in_arrays = [q, k, v]
        in_specs = [
            pl.BlockSpec((1, H, tq, Dh), lambda b, i: (b, 0, i, 0)),
            pl.BlockSpec((1, H, Dh, Lk), lambda b, i: (b, 0, 0, 0)),  # K resident per batch
            pl.BlockSpec((1, H, Lk, Dv), lambda b, i: (b, 0, 0, 0)),  # V resident per batch
        ]
        mask_bytes = 0
        if has_kv_mask:
            kvm = jnp.broadcast_to(key_value_mask.astype(bool), (Lq, Lk, B))
            kvm = jnp.transpose(kvm, (2, 0, 1))                       # [B, Lq, Lk]
            if has_pad_mask:                                          # fold pad mask in
                pad = jnp.transpose(key_padding_mask.astype(bool))    # [B, Lk]
                kvm = kvm & pad[:, None, :]
            in_arrays.append(kvm.astype(jnp.int8))
            in_specs.append(pl.BlockSpec((1, tq, Lk), lambda b, i: (b, i, 0)))
            mask_bytes = B * Lq * Lk
        elif has_pad_mask:
            pad = jnp.transpose(key_padding_mask.astype(bool)).reshape(B, 1, Lk)
            in_arrays.append(pad.astype(jnp.int8))
            in_specs.append(pl.BlockSpec((1, 1, Lk), lambda b, i: (b, 0, 0)))
            mask_bytes = B * Lk

        # Projection weight (pre-transposed, bf16) + bias: constant index over the grid.
        # NOTE: these are still double-buffered by default (accounted in block_bytes);
        # pipeline_mode=pl.Buffered(1) would free one vdim^2 buffer where supported.
        in_arrays += [self.proj_w_t, self.proj_b]
        in_specs += [
            pl.BlockSpec((vdim, vdim), lambda b, i: (0, 0)),
            pl.BlockSpec((1, vdim), lambda b, i: (0, 0)),
        ]

        kernel = _make_fused_attention_kernel(
            scale=self.scale, head_num=H, value_head_dim=Dv,
            has_mask=has_mask, matmul_dtype=cdt, attn_dtype=adt)

        flops = 2 * B * H * Lq * Lk * (Dh + Dv) + 2 * B * Lq * vdim * vdim
        bytes_accessed = (
            (B * H * Lq * Dh + B * H * Lk * Dh + B * H * Lk * Dv) * msize  # q, k, v
            + B * H * Lq * Lk * asize                                      # attn out
            + B * Lq * vdim * 4                                            # y out
            + vdim * vdim * msize + vdim * 4                               # weight+bias
            + mask_bytes)
        cost = pl.CostEstimate(flops=int(flops),
                               transcendentals=int(B * H * Lq * Lk),
                               bytes_accessed=int(bytes_accessed))

        # On v7x (2 TensorCores) shard the grid along batch so the per-batch resident
        # K/V blocks are fetched once per core; single-TC chips are unaffected.
        dims = ("parallel", "arbitrary") if B >= 2 else ("parallel", "parallel")

        attn_bhqk, y_bqd = pl.pallas_call(
            kernel,
            grid=(B, nq),
            in_specs=in_specs,
            out_specs=[
                pl.BlockSpec((1, H, tq, Lk), lambda b, i: (b, 0, i, 0)),  # lane-dense (Lk)
                pl.BlockSpec((1, tq, vdim), lambda b, i: (b, i, 0)),      # lane-dense (vdim)
            ],
            out_shape=[
                jax.ShapeDtypeStruct((B, H, Lq, Lk), adt),
                jax.ShapeDtypeStruct((B, Lq, vdim), jnp.float32),
            ],
            scratch_shapes=[pltpu.VMEM((tq, vdim), jnp.float32)],
            compiler_params=pltpu.CompilerParams(
                dimension_semantics=dims,
                vmem_limit_bytes=vmem_limit,
            ),
            cost_estimate=cost,
        )(*in_arrays)

        # glue back to the torch module's return conventions
        attn = jnp.transpose(attn_bhqk, (2, 3, 0, 1))   # [Lq, Lk, B, H]
        out = jnp.transpose(y_bqd, (1, 0, 2))           # [Lq, B, value_dim]
        return out, attn


def _reference_forward(mha, query, key, value, key_value_mask, key_padding_mask):
    """Pure-JAX f32 mirror of the torch forward for correctness checking."""
    Lq, B, _ = query.shape
    Lk = key.shape[0]
    H, Dh, Dv = mha.head_num, mha.head_kv_dim, mha.head_v_dim
    q = query.reshape(Lq, B, H, Dh)
    k = key.reshape(Lk, B, H, Dh)
    v = value.reshape(Lk, B, H, Dv)
    scores = jnp.einsum("ibhd,jbhd->ijbh", q, k) * mha.scale
    if key_value_mask is not None:
        kvm = jnp.broadcast_to(key_value_mask.astype(bool), (Lq, Lk, B))
        scores = jnp.where(kvm[..., None], scores, -jnp.inf)
    if key_padding_mask is not None:
        scores = jnp.where(
            key_padding_mask.astype(bool)[None, :, :, None], scores, -jnp.inf)
    attn = jax.nn.softmax(scores, axis=1)
    x = jnp.einsum("ijbh,jbhd->ibhd", attn, v).reshape(Lq, B, mha.value_dim)
    out = x @ mha.proj_w.T + mha.proj_b.reshape(1, 1, -1)
    return out, attn


if __name__ == "__main__":
    Lq, Lk, B, dim, H = 8, 8, 2, 32, 4

    root = jax.random.PRNGKey(0)
    kq, kk, kv, kparams = jax.random.split(root, 4)
    query = jax.random.normal(kq, (Lq, B, dim), jnp.float32)
    key_ = jax.random.normal(kk, (Lk, B, dim), jnp.float32)
    value = jax.random.normal(kv, (Lk, B, dim), jnp.float32)

    # key_padding_mask: [Lk, B] bool (True = valid key)
    key_padding_mask = jnp.ones((Lk, B), dtype=bool).at[Lk - 2:, 0].set(False)
    # key_value_mask: [Lq, Lk, B] bool (causal visibility)
    key_value_mask = jnp.broadcast_to(
        jnp.tril(jnp.ones((Lq, Lk), dtype=bool))[:, :, None], (Lq, Lk, B))

    mha = MultiHeadAttentionPallas(dim=dim, head_num=H, key=kparams)

    out, attn = mha(
        query=query,
        key=key_,
        value=value,
        key_value_mask=key_value_mask,
        key_padding_mask=key_padding_mask,
    )
    jax.block_until_ready((out, attn))

    ref_out, ref_attn = _reference_forward(
        mha, query, key_, value, key_value_mask, key_padding_mask)

    assert out.shape == (Lq, B, dim)
    assert attn.shape == (Lq, Lk, B, H)
    # Tolerances account for bf16 MXU inputs / bf16 projection weights and the bf16
    # attention-map output (softmax + accumulation remain f32, exact normalization).
    assert jnp.allclose(attn.astype(jnp.float32), ref_attn, atol=5e-2, rtol=5e-2)
    assert jnp.allclose(out, ref_out, atol=1e-1, rtol=1e-1)

    print("KERNEL_OK")
</pallas_src>

<mosaic_0001>
module attributes {stable_mosaic.version = 11 : i64} {
  func.func @kernel(%arg0: i32, %arg1: i32, %arg2: memref<1x4x8x8xbf16, #tpu.memory_space<vmem>>, %arg3: memref<1x4x8x8xbf16, #tpu.memory_space<vmem>>, %arg4: memref<1x4x8x8xbf16, #tpu.memory_space<vmem>>, %arg5: memref<1x8x8xi8, #tpu.memory_space<vmem>>, %arg6: memref<32x32xbf16, #tpu.memory_space<vmem>>, %arg7: memref<1x32xf32, #tpu.memory_space<vmem>>, %arg8: memref<1x4x8x8xbf16, #tpu.memory_space<vmem>>, %arg9: memref<1x8x32xf32, #tpu.memory_space<vmem>>, %arg10: memref<8x32xf32, #tpu.memory_space<vmem>>) attributes {dimension_semantics = [#tpu.dimension_semantics<parallel>, #tpu.dimension_semantics<arbitrary>], iteration_bounds = array<i64: 2, 1>, scalar_prefetch = 0 : i64, scratch_operands = 1 : i64, tpu.core_type = #tpu.core_type<tc>, window_params = [{transform_indices = @transform_0, window_bounds = array<i64: 1, 4, 8, 8>}, {transform_indices = @transform_1, window_bounds = array<i64: 1, 4, 8, 8>}, {transform_indices = @transform_2, window_bounds = array<i64: 1, 4, 8, 8>}, {transform_indices = @transform_3, window_bounds = array<i64: 1, 8, 8>}, {pipeline_mode = #tpu.pipeline_mode<synchronous>, transform_indices = @transform_4, window_bounds = array<i64: 32, 32>}, {pipeline_mode = #tpu.pipeline_mode<synchronous>, transform_indices = @transform_5, window_bounds = array<i64: 1, 32>}, {transform_indices = @transform_6, window_bounds = array<i64: 1, 4, 8, 8>}, {transform_indices = @transform_7, window_bounds = array<i64: 1, 8, 32>}]} {
    %c0 = arith.constant 0 : index
    %c0_0 = arith.constant 0 : index
    %c0_1 = arith.constant 0 : index
    %0 = vector.load %arg5[%c0, %c0_0, %c0_1] : memref<1x8x8xi8, #tpu.memory_space<vmem>>, vector<1x8x8xi8>
    %1 = vector.shape_cast %0 : vector<1x8x8xi8> to vector<8x8xi8>
    %c0_i8 = arith.constant 0 : i8
    %2 = vector.broadcast %c0_i8 : i8 to vector<8x8xi8>
    %3 = arith.cmpi ne, %1, %2 : vector<8x8xi8>
    %c0_2 = arith.constant 0 : index
    %c0_3 = arith.constant 0 : index
    %c0_4 = arith.constant 0 : index
    %c0_5 = arith.constant 0 : index
    %4 = vector.load %arg2[%c0_2, %c0_3, %c0_4, %c0_5] : memref<1x4x8x8xbf16, #tpu.memory_space<vmem>>, vector<1x1x8x8xbf16>
    %5 = vector.shape_cast %4 : vector<1x1x8x8xbf16> to vector<8x8xbf16>
    %cst = arith.constant 3.535160e-01 : bf16
    %6 = vector.broadcast %cst : bf16 to vector<8x8xbf16>
    %7 = arith.mulf %5, %6 : vector<8x8xbf16>
    %c0_6 = arith.constant 0 : index
    %c0_7 = arith.constant 0 : index
    %c0_8 = arith.constant 0 : index
    %c0_9 = arith.constant 0 : index
    %8 = vector.load %arg3[%c0_6, %c0_7, %c0_8, %c0_9] : memref<1x4x8x8xbf16, #tpu.memory_space<vmem>>, vector<1x1x8x8xbf16>
    %9 = vector.shape_cast %8 : vector<1x1x8x8xbf16> to vector<8x8xbf16>
    %cst_10 = arith.constant dense<0.000000e+00> : vector<8x8xf32>
    %10 = tpu.matmul %7, %9, %cst_10 {dimension_numbers = #tpu.dot_dimension_numbers<[1], [0], [0], [1], [0, 0, 1, 1], [], []>} : vector<8x8xbf16>, vector<8x8xbf16>, vector<8x8xf32> -> vector<8x8xf32>
    %cst_11 = arith.constant 0xFF800000 : f32
    %11 = vector.broadcast %cst_11 : f32 to vector<8x8xf32>
    %12 = arith.select %3, %10, %11 : vector<8x8xi1>, vector<8x8xf32>
    %cst_12 = arith.constant dense<0xFF800000> : vector<8xf32>
    %13 = vector.multi_reduction <maximumf>, %12, %cst_12 [1] : vector<8x8xf32> to vector<8xf32>
    %14 = vector.shape_cast %13 : vector<8xf32> to vector<8x1xf32>
    %15 = vector.broadcast %14 : vector<8x1xf32> to vector<8x8xf32>
    %16 = arith.subf %12, %15 : vector<8x8xf32>
    %17 = math.exp %16 : vector<8x8xf32>
    %cst_13 = arith.constant dense<0.000000e+00> : vector<8xf32>
    %18 = vector.multi_reduction <add>, %17, %cst_13 [1] : vector<8x8xf32> to vector<8xf32>
    %19 = vector.shape_cast %18 : vector<8xf32> to vector<8x1xf32>
    %20 = tpu.reciprocal %19 : vector<8x1xf32> -> vector<8x1xf32>
    %21 = vector.broadcast %20 : vector<8x1xf32> to vector<8x8xf32>
    %22 = arith.mulf %17, %21 : vector<8x8xf32>
    %23 = arith.truncf %22 : vector<8x8xf32> to vector<8x8xbf16>
    %c0_14 = arith.constant 0 : index
    %c0_15 = arith.constant 0 : index
    %c0_16 = arith.constant 0 : index
    %c0_17 = arith.constant 0 : index
    %24 = vector.load %arg8[%c0_14, %c0_15, %c0_16, %c0_17] : memref<1x4x8x8xbf16, #tpu.memory_space<vmem>>, vector<1x1x8x8xbf16>
    %25 = vector.shape_cast %24 : vector<1x1x8x8xbf16> to vector<8x8xbf16>
    %26 = vector.shape_cast %23 : vector<8x8xbf16> to vector<1x1x8x8xbf16>
    tpu.vector_store %arg8[%c0_14, %c0_15, %c0_16, %c0_17], %26 {strides = array<i32>} : memref<1x4x8x8xbf16, #tpu.memory_space<vmem>>, vector<1x1x8x8xbf16>,
    %c0_18 = arith.constant 0 : index
    %c0_19 = arith.constant 0 : index
    %c0_20 = arith.constant 0 : index
    %c0_21 = arith.constant 0 : index
    %27 = vector.load %arg4[%c0_18, %c0_19, %c0_20, %c0_21] : memref<1x4x8x8xbf16, #tpu.memory_space<vmem>>, vector<1x1x8x8xbf16>
    %28 = vector.shape_cast %27 : vector<1x1x8x8xbf16> to vector<8x8xbf16>
    %29 = arith.truncf %22 : vector<8x8xf32> to vector<8x8xbf16>
    %cst_22 = arith.constant dense<0.000000e+00> : vector<8x8xf32>
    %30 = tpu.matmul %29, %28, %cst_22 {dimension_numbers = #tpu.dot_dimension_numbers<[1], [0], [0], [1], [0, 0, 1, 1], [], []>} : vector<8x8xbf16>, vector<8x8xbf16>, vector<8x8xf32> -> vector<8x8xf32>
    %c0_23 = arith.constant 0 : index
    %c0_24 = arith.constant 0 : index
    %31 = vector.load %arg10[%c0_23, %c0_24] : memref<8x32xf32, #tpu.memory_space<vmem>>, vector<8x8xf32>
    tpu.vector_store %arg10[%c0_23, %c0_24], %30 {strides = array<i32>} : memref<8x32xf32, #tpu.memory_space<vmem>>, vector<8x8xf32>,
    %c0_25 = arith.constant 0 : index
    %c1 = arith.constant 1 : index
    %c0_26 = arith.constant 0 : index
    %c0_27 = arith.constant 0 : index
    %32 = vector.load %arg2[%c0_25, %c1, %c0_26, %c0_27] : memref<1x4x8x8xbf16, #tpu.memory_space<vmem>>, vector<1x1x8x8xbf16>
    %33 = vector.shape_cast %32 : vector<1x1x8x8xbf16> to vector<8x8xbf16>
    %cst_28 = arith.constant 3.535160e-01 : bf16
    %34 = vector.broadcast %cst_28 : bf16 to vector<8x8xbf16>
    %35 = arith.mulf %33, %34 : vector<8x8xbf16>
    %c0_29 = arith.constant 0 : index
    %c1_30 = arith.constant 1 : index
    %c0_31 = arith.constant 0 : index
    %c0_32 = arith.constant 0 : index
    %36 = vector.load %arg3[%c0_29, %c1_30, %c0_31, %c0_32] : memref<1x4x8x8xbf16, #tpu.memory_space<vmem>>, vector<1x1x8x8xbf16>
    %37 = vector.shape_cast %36 : vector<1x1x8x8xbf16> to vector<8x8xbf16>
    %cst_33 = arith.constant dense<0.000000e+00> : vector<8x8xf32>
    %38 = tpu.matmul %35, %37, %cst_33 {dimension_numbers = #tpu.dot_dimension_numbers<[1], [0], [0], [1], [0, 0, 1, 1], [], []>} : vector<8x8xbf16>, vector<8x8xbf16>, vector<8x8xf32> -> vector<8x8xf32>
    %cst_34 = arith.constant 0xFF800000 : f32
    %39 = vector.broadcast %cst_34 : f32 to vector<8x8xf32>
    %40 = arith.select %3, %38, %39 : vector<8x8xi1>, vector<8x8xf32>
    %cst_35 = arith.constant dense<0xFF800000> : vector<8xf32>
    %41 = vector.multi_reduction <maximumf>, %40, %cst_35 [1] : vector<8x8xf32> to vector<8xf32>
    %42 = vector.shape_cast %41 : vector<8xf32> to vector<8x1xf32>
    %43 = vector.broadcast %42 : vector<8x1xf32> to vector<8x8xf32>
    %44 = arith.subf %40, %43 : vector<8x8xf32>
    %45 = math.exp %44 : vector<8x8xf32>
    %cst_36 = arith.constant dense<0.000000e+00> : vector<8xf32>
    %46 = vector.multi_reduction <add>, %45, %cst_36 [1] : vector<8x8xf32> to vector<8xf32>
    %47 = vector.shape_cast %46 : vector<8xf32> to vector<8x1xf32>
    %48 = tpu.reciprocal %47 : vector<8x1xf32> -> vector<8x1xf32>
    %49 = vector.broadcast %48 : vector<8x1xf32> to vector<8x8xf32>
    %50 = arith.mulf %45, %49 : vector<8x8xf32>
    %51 = arith.truncf %50 : vector<8x8xf32> to vector<8x8xbf16>
    %c0_37 = arith.constant 0 : index
    %c1_38 = arith.constant 1 : index
    %c0_39 = arith.constant 0 : index
    %c0_40 = arith.constant 0 : index
    %52 = vector.load %arg8[%c0_37, %c1_38, %c0_39, %c0_40] : memref<1x4x8x8xbf16, #tpu.memory_space<vmem>>, vector<1x1x8x8xbf16>
    %53 = vector.shape_cast %52 : vector<1x1x8x8xbf16> to vector<8x8xbf16>
    %54 = vector.shape_cast %51 : vector<8x8xbf16> to vector<1x1x8x8xbf16>
    tpu.vector_store %arg8[%c0_37, %c1_38, %c0_39, %c0_40], %54 {strides = array<i32>} : memref<1x4x8x8xbf16, #tpu.memory_space<vmem>>, vector<1x1x8x8xbf16>,
    %c0_41 = arith.constant 0 : index
    %c1_42 = arith.constant 1 : index
    %c0_43 = arith.constant 0 : index
    %c0_44 = arith.constant 0 : index
    %55 = vector.load %arg4[%c0_41, %c1_42, %c0_43, %c0_44] : memref<1x4x8x8xbf16, #tpu.memory_space<vmem>>, vector<1x1x8x8xbf16>
    %56 = vector.shape_cast %55 : vector<1x1x8x8xbf16> to vector<8x8xbf16>
    %57 = arith.truncf %50 : vector<8x8xf32> to vector<8x8xbf16>
    %cst_45 = arith.constant dense<0.000000e+00> : vector<8x8xf32>
    %58 = tpu.matmul %57, %56, %cst_45 {dimension_numbers = #tpu.dot_dimension_numbers<[1], [0], [0], [1], [0, 0, 1, 1], [], []>} : vector<8x8xbf16>, vector<8x8xbf16>, vector<8x8xf32> -> vector<8x8xf32>
    %c0_46 = arith.constant 0 : index
    %c8 = arith.constant 8 : index
    %59 = vector.load %arg10[%c0_46, %c8] : memref<8x32xf32, #tpu.memory_space<vmem>>, vector<8x8xf32>
    tpu.vector_store %arg10[%c0_46, %c8], %58 {strides = array<i32>} : memref<8x32xf32, #tpu.memory_space<vmem>>, vector<8x8xf32>,
    %c0_47 = arith.constant 0 : index
    %c2 = arith.constant 2 : index
    %c0_48 = arith.constant 0 : index
    %c0_49 = arith.constant 0 : index
    %60 = vector.load %arg2[%c0_47, %c2, %c0_48, %c0_49] : memref<1x4x8x8xbf16, #tpu.memory_space<vmem>>, vector<1x1x8x8xbf16>
    %61 = vector.shape_cast %60 : vector<1x1x8x8xbf16> to vector<8x8xbf16>
    %cst_50 = arith.constant 3.535160e-01 : bf16
    %62 = vector.broadcast %cst_50 : bf16 to vector<8x8xbf16>
    %63 = arith.mulf %61, %62 : vector<8x8xbf16>
    %c0_51 = arith.constant 0 : index
    %c2_52 = arith.constant 2 : index
    %c0_53 = arith.constant 0 : index
    %c0_54 = arith.constant 0 : index
    %64 = vector.load %arg3[%c0_51, %c2_52, %c0_53, %c0_54] : memref<1x4x8x8xbf16, #tpu.memory_space<vmem>>, vector<1x1x8x8xbf16>
    %65 = vector.shape_cast %64 : vector<1x1x8x8xbf16> to vector<8x8xbf16>
    %cst_55 = arith.constant dense<0.000000e+00> : vector<8x8xf32>
    %66 = tpu.matmul %63, %65, %cst_55 {dimension_numbers = #tpu.dot_dimension_numbers<[1], [0], [0], [1], [0, 0, 1, 1], [], []>} : vector<8x8xbf16>, vector<8x8xbf16>, vector<8x8xf32> -> vector<8x8xf32>
    %cst_56 = arith.constant 0xFF800000 : f32
    %67 = vector.broadcast %cst_56 : f32 to vector<8x8xf32>
    %68 = arith.select %3, %66, %67 : vector<8x8xi1>, vector<8x8xf32>
    %cst_57 = arith.constant dense<0xFF800000> : vector<8xf32>
    %69 = vector.multi_reduction <maximumf>, %68, %cst_57 [1] : vector<8x8xf32> to vector<8xf32>
    %70 = vector.shape_cast %69 : vector<8xf32> to vector<8x1xf32>
    %71 = vector.broadcast %70 : vector<8x1xf32> to vector<8x8xf32>
    %72 = arith.subf %68, %71 : vector<8x8xf32>
    %73 = math.exp %72 : vector<8x8xf32>
    %cst_58 = arith.constant dense<0.000000e+00> : vector<8xf32>
    %74 = vector.multi_reduction <add>, %73, %cst_58 [1] : vector<8x8xf32> to vector<8xf32>
    %75 = vector.shape_cast %74 : vector<8xf32> to vector<8x1xf32>
    %76 = tpu.reciprocal %75 : vector<8x1xf32> -> vector<8x1xf32>
    %77 = vector.broadcast %76 : vector<8x1xf32> to vector<8x8xf32>
    %78 = arith.mulf %73, %77 : vector<8x8xf32>
    %79 = arith.truncf %78 : vector<8x8xf32> to vector<8x8xbf16>
    %c0_59 = arith.constant 0 : index
    %c2_60 = arith.constant 2 : index
    %c0_61 = arith.constant 0 : index
    %c0_62 = arith.constant 0 : index
    %80 = vector.load %arg8[%c0_59, %c2_60, %c0_61, %c0_62] : memref<1x4x8x8xbf16, #tpu.memory_space<vmem>>, vector<1x1x8x8xbf16>
    %81 = vector.shape_cast %80 : vector<1x1x8x8xbf16> to vector<8x8xbf16>
    %82 = vector.shape_cast %79 : vector<8x8xbf16> to vector<1x1x8x8xbf16>
    tpu.vector_store %arg8[%c0_59, %c2_60, %c0_61, %c0_62], %82 {strides = array<i32>} : memref<1x4x8x8xbf16, #tpu.memory_space<vmem>>, vector<1x1x8x8xbf16>,
    %c0_63 = arith.constant 0 : index
    %c2_64 = arith.constant 2 : index
    %c0_65 = arith.constant 0 : index
    %c0_66 = arith.constant 0 : index
    %83 = vector.load %arg4[%c0_63, %c2_64, %c0_65, %c0_66] : memref<1x4x8x8xbf16, #tpu.memory_space<vmem>>, vector<1x1x8x8xbf16>
    %84 = vector.shape_cast %83 : vector<1x1x8x8xbf16> to vector<8x8xbf16>
    %85 = arith.truncf %78 : vector<8x8xf32> to vector<8x8xbf16>
    %cst_67 = arith.constant dense<0.000000e+00> : vector<8x8xf32>
    %86 = tpu.matmul %85, %84, %cst_67 {dimension_numbers = #tpu.dot_dimension_numbers<[1], [0], [0], [1], [0, 0, 1, 1], [], []>} : vector<8x8xbf16>, vector<8x8xbf16>, vector<8x8xf32> -> vector<8x8xf32>
    %c0_68 = arith.constant 0 : index
    %c16 = arith.constant 16 : index
    %87 = vector.load %arg10[%c0_68, %c16] : memref<8x32xf32, #tpu.memory_space<vmem>>, vector<8x8xf32>
    tpu.vector_store %arg10[%c0_68, %c16], %86 {strides = array<i32>} : memref<8x32xf32, #tpu.memory_space<vmem>>, vector<8x8xf32>,
    %c0_69 = arith.constant 0 : index
    %c3 = arith.constant 3 : index
    %c0_70 = arith.constant 0 : index
    %c0_71 = arith.constant 0 : index
    %88 = vector.load %arg2[%c0_69, %c3, %c0_70, %c0_71] : memref<1x4x8x8xbf16, #tpu.memory_space<vmem>>, vector<1x1x8x8xbf16>
    %89 = vector.shape_cast %88 : vector<1x1x8x8xbf16> to vector<8x8xbf16>
    %cst_72 = arith.constant 3.535160e-01 : bf16
    %90 = vector.broadcast %cst_72 : bf16 to vector<8x8xbf16>
    %91 = arith.mulf %89, %90 : vector<8x8xbf16>
    %c0_73 = arith.constant 0 : index
    %c3_74 = arith.constant 3 : index
    %c0_75 = arith.constant 0 : index
    %c0_76 = arith.constant 0 : index
    %92 = vector.load %arg3[%c0_73, %c3_74, %c0_75, %c0_76] : memref<1x4x8x8xbf16, #tpu.memory_space<vmem>>, vector<1x1x8x8xbf16>
    %93 = vector.shape_cast %92 : vector<1x1x8x8xbf16> to vector<8x8xbf16>
    %cst_77 = arith.constant dense<0.000000e+00> : vector<8x8xf32>
    %94 = tpu.matmul %91, %93, %cst_77 {dimension_numbers = #tpu.dot_dimension_numbers<[1], [0], [0], [1], [0, 0, 1, 1], [], []>} : vector<8x8xbf16>, vector<8x8xbf16>, vector<8x8xf32> -> vector<8x8xf32>
    %cst_78 = arith.constant 0xFF800000 : f32
    %95 = vector.broadcast %cst_78 : f32 to vector<8x8xf32>
    %96 = arith.select %3, %94, %95 : vector<8x8xi1>, vector<8x8xf32>
    %cst_79 = arith.constant dense<0xFF800000> : vector<8xf32>
    %97 = vector.multi_reduction <maximumf>, %96, %cst_79 [1] : vector<8x8xf32> to vector<8xf32>
    %98 = vector.shape_cast %97 : vector<8xf32> to vector<8x1xf32>
    %99 = vector.broadcast %98 : vector<8x1xf32> to vector<8x8xf32>
    %100 = arith.subf %96, %99 : vector<8x8xf32>
    %101 = math.exp %100 : vector<8x8xf32>
    %cst_80 = arith.constant dense<0.000000e+00> : vector<8xf32>
    %102 = vector.multi_reduction <add>, %101, %cst_80 [1] : vector<8x8xf32> to vector<8xf32>
    %103 = vector.shape_cast %102 : vector<8xf32> to vector<8x1xf32>
    %104 = tpu.reciprocal %103 : vector<8x1xf32> -> vector<8x1xf32>
    %105 = vector.broadcast %104 : vector<8x1xf32> to vector<8x8xf32>
    %106 = arith.mulf %101, %105 : vector<8x8xf32>
    %107 = arith.truncf %106 : vector<8x8xf32> to vector<8x8xbf16>
    %c0_81 = arith.constant 0 : index
    %c3_82 = arith.constant 3 : index
    %c0_83 = arith.constant 0 : index
    %c0_84 = arith.constant 0 : index
    %108 = vector.load %arg8[%c0_81, %c3_82, %c0_83, %c0_84] : memref<1x4x8x8xbf16, #tpu.memory_space<vmem>>, vector<1x1x8x8xbf16>
    %109 = vector.shape_cast %108 : vector<1x1x8x8xbf16> to vector<8x8xbf16>
    %110 = vector.shape_cast %107 : vector<8x8xbf16> to vector<1x1x8x8xbf16>
    tpu.vector_store %arg8[%c0_81, %c3_82, %c0_83, %c0_84], %110 {strides = array<i32>} : memref<1x4x8x8xbf16, #tpu.memory_space<vmem>>, vector<1x1x8x8xbf16>,
    %c0_85 = arith.constant 0 : index
    %c3_86 = arith.constant 3 : index
    %c0_87 = arith.constant 0 : index
    %c0_88 = arith.constant 0 : index
    %111 = vector.load %arg4[%c0_85, %c3_86, %c0_87, %c0_88] : memref<1x4x8x8xbf16, #tpu.memory_space<vmem>>, vector<1x1x8x8xbf16>
    %112 = vector.shape_cast %111 : vector<1x1x8x8xbf16> to vector<8x8xbf16>
    %113 = arith.truncf %106 : vector<8x8xf32> to vector<8x8xbf16>
    %cst_89 = arith.constant dense<0.000000e+00> : vector<8x8xf32>
    %114 = tpu.matmul %113, %112, %cst_89 {dimension_numbers = #tpu.dot_dimension_numbers<[1], [0], [0], [1], [0, 0, 1, 1], [], []>} : vector<8x8xbf16>, vector<8x8xbf16>, vector<8x8xf32> -> vector<8x8xf32>
    %c0_90 = arith.constant 0 : index
    %c24 = arith.constant 24 : index
    %115 = vector.load %arg10[%c0_90, %c24] : memref<8x32xf32, #tpu.memory_space<vmem>>, vector<8x8xf32>
    tpu.vector_store %arg10[%c0_90, %c24], %114 {strides = array<i32>} : memref<8x32xf32, #tpu.memory_space<vmem>>, vector<8x8xf32>,
    %c0_91 = arith.constant 0 : index
    %c0_92 = arith.constant 0 : index
    %116 = vector.load %arg10[%c0_91, %c0_92] : memref<8x32xf32, #tpu.memory_space<vmem>>, vector<8x32xf32>
    %117 = arith.truncf %116 : vector<8x32xf32> to vector<8x32xbf16>
    %c0_93 = arith.constant 0 : index
    %c0_94 = arith.constant 0 : index
    %118 = vector.load %arg6[%c0_93, %c0_94] : memref<32x32xbf16, #tpu.memory_space<vmem>>, vector<32x32xbf16>
    %cst_95 = arith.constant dense<0.000000e+00> : vector<8x32xf32>
    %119 = tpu.matmul %117, %118, %cst_95 {dimension_numbers = #tpu.dot_dimension_numbers<[1], [0], [0], [1], [0, 0, 1, 1], [], []>} : vector<8x32xbf16>, vector<32x32xbf16>, vector<8x32xf32> -> vector<8x32xf32>
    %c0_96 = arith.constant 0 : index
    %c0_97 = arith.constant 0 : index
    %120 = vector.load %arg7[%c0_96, %c0_97] : memref<1x32xf32, #tpu.memory_space<vmem>>, vector<1x32xf32>
    %121 = vector.broadcast %120 : vector<1x32xf32> to vector<8x32xf32>
    %122 = arith.addf %119, %121 : vector<8x32xf32>
    %c0_98 = arith.constant 0 : index
    %c0_99 = arith.constant 0 : index
    %c0_100 = arith.constant 0 : index
    %123 = vector.load %arg9[%c0_98, %c0_99, %c0_100] : memref<1x8x32xf32, #tpu.memory_space<vmem>>, vector<1x8x32xf32>
    %124 = vector.shape_cast %123 : vector<1x8x32xf32> to vector<8x32xf32>
    %125 = vector.shape_cast %122 : vector<8x32xf32> to vector<1x8x32xf32>
    tpu.vector_store %arg9[%c0_98, %c0_99, %c0_100], %125 {strides = array<i32>} : memref<1x8x32xf32, #tpu.memory_space<vmem>>, vector<1x8x32xf32>,
    return
  }
  func.func @transform_0(%arg0: i32, %arg1: i32) -> (i32, i32, i32, i32) {
    %c0_i32 = arith.constant 0 : i32
    %c0_i32_0 = arith.constant 0 : i32
    %c0_i32_1 = arith.constant 0 : i32
    return %arg0, %c0_i32, %arg1, %c0_i32_0 : i32, i32, i32, i32
  }
  func.func @transform_1(%arg0: i32, %arg1: i32) -> (i32, i32, i32, i32) {
    %c0_i32 = arith.constant 0 : i32
    %c0_i32_0 = arith.constant 0 : i32
    %c0_i32_1 = arith.constant 0 : i32
    %c0_i32_2 = arith.constant 0 : i32
    return %arg0, %c0_i32, %c0_i32_0, %c0_i32_1 : i32, i32, i32, i32
  }
  func.func @transform_2(%arg0: i32, %arg1: i32) -> (i32, i32, i32, i32) {
    %c0_i32 = arith.constant 0 : i32
    %c0_i32_0 = arith.constant 0 : i32
    %c0_i32_1 = arith.constant 0 : i32
    %c0_i32_2 = arith.constant 0 : i32
    return %arg0, %c0_i32, %c0_i32_0, %c0_i32_1 : i32, i32, i32, i32
  }
  func.func @transform_3(%arg0: i32, %arg1: i32) -> (i32, i32, i32) {
    %c0_i32 = arith.constant 0 : i32
    %c0_i32_0 = arith.constant 0 : i32
    return %arg0, %arg1, %c0_i32 : i32, i32, i32
  }
  func.func @transform_4(%arg0: i32, %arg1: i32) -> (i32, i32) {
    %c0_i32 = arith.constant 0 : i32
    %c0_i32_0 = arith.constant 0 : i32
    %c0_i32_1 = arith.constant 0 : i32
    return %c0_i32, %c0_i32_0 : i32, i32
  }
  func.func @transform_5(%arg0: i32, %arg1: i32) -> (i32, i32) {
    %c0_i32 = arith.constant 0 : i32
    %c0_i32_0 = arith.constant 0 : i32
    %c0_i32_1 = arith.constant 0 : i32
    return %c0_i32, %c0_i32_0 : i32, i32
  }
  func.func @transform_6(%arg0: i32, %arg1: i32) -> (i32, i32, i32, i32) {
    %c0_i32 = arith.constant 0 : i32
    %c0_i32_0 = arith.constant 0 : i32
    %c0_i32_1 = arith.constant 0 : i32
    return %arg0, %c0_i32, %arg1, %c0_i32_0 : i32, i32, i32, i32
  }
  func.func @transform_7(%arg0: i32, %arg1: i32) -> (i32, i32, i32) {
    %c0_i32 = arith.constant 0 : i32
    %c0_i32_0 = arith.constant 0 : i32
    return %arg0, %arg1, %c0_i32 : i32, i32, i32
  }
}

</mosaic_0001>

<llo_original>
// kernel: tpu_custom_call.1
$region0: #{tpu_custom_call.1}
  #allocation0 [shape = 'u32[]', space=smem, size = 0x4, offset = 0x4, fixed_abs, tag = 'smem constant byte address 0x4 - core index']
  #allocation1 [shape = 'u32[144,128]{1,0:T(1,128)}', space=vmem, size = 0x12000, scoped, tag = 'internal scratch']
  #allocation2 [shape = 'f32[8,32]{1,0:T(8,128)}', space=vmem, size = 0x1000, scoped, tag = 'scratch operand']
  %s0 = inlined_call_operand.hbm [shape: bf16[2,4,8,8], index: 0, kind: input, shape index: {}]
  %s1 = inlined_call_operand.hbm [shape: bf16[2,4,8,8], index: 1, kind: input, shape index: {}]
  %s2 = inlined_call_operand.hbm [shape: bf16[2,4,8,8], index: 2, kind: input, shape index: {}]
  %s3 = inlined_call_operand.vmem [shape: s8[2,8,8], index: 3, kind: input, shape index: {}]
  %s4 = inlined_call_operand.hbm [shape: bf16[32,32], index: 4, kind: input, shape index: {}]
  %s5 = inlined_call_operand.vmem [shape: f32[1,32], index: 5, kind: input, shape index: {}]
  %s6 = inlined_call_operand.hbm [shape: bf16[2,4,8,8], index: 6, kind: output, shape index: {0}]
  %s7 = inlined_call_operand.hbm [shape: f32[2,8,32], index: 7, kind: output, shape index: {1}]
  %8 = xla_tuple %s6, %s7
  %s9 = sld [smem:[#allocation0]]
  $region81: #{tpu_custom_call.1} parent=0
    _
  %s11 = ssub.s32 1, %s9
  %s12 = scalar_select 0, %s11, %s9
  $region1: #{tpu_custom_call.1} parent=0
    #allocation3 [shape = 'u8[16384]{0}', space=vmem, size = 0x4000, scoped, tag = 'input window, operand 0']
    #allocation4 [shape = 's32[2]{0}', space=sflag, size = 0x8, scoped, tag = 'scoped memory for tpu_custom_call.1']
    #allocation5 [shape = 's32[2]{0}', space=sflag, size = 0x8, scoped, tag = 'scoped memory for tpu_custom_call.1']
    #allocation6 [shape = 'u8[16384]{0}', space=vmem, size = 0x4000, scoped, tag = 'input window, operand 1']
    #allocation7 [shape = 's32[2]{0}', space=sflag, size = 0x8, scoped, tag = 'scoped memory for tpu_custom_call.1']
    #allocation8 [shape = 'u8[16384]{0}', space=vmem, size = 0x4000, scoped, tag = 'input window, operand 2']
    #allocation9 [shape = 'u8[8192]{0}', space=vmem, size = 0x2000, scoped, tag = 'input window, operand 4, single buffered']
    #allocation10 [shape = 's32[1]{0}', space=sflag, size = 0x4, scoped, tag = 'scoped memory for tpu_custom_call.1']
    #allocation11 [shape = 'u8[16384]{0}', space=vmem, size = 0x4000, scoped, tag = 'output window, operand 0']
    #allocation12 [shape = 'u8[8192]{0}', space=vmem, size = 0x2000, scoped, tag = 'output window, operand 1']
    #allocation13 [shape = 's32[2]{0}', space=sflag, size = 0x8, scoped, tag = 'scoped memory for tpu_custom_call.1']
    %13 = vsyncpa [#allocation4], 0
    %s14 = scalar_lea.sflag [#allocation4], 1
    %15 = vsyncpa %s14, 0
    %16 = vsyncpa [#allocation7], 0
    %s17 = scalar_lea.sflag [#allocation7], 1
    %18 = vsyncpa %s17, 0
    %19 = vsyncpa [#allocation10], 0
    %20 = vsyncpa [#allocation5], 0
    %s21 = scalar_lea.sflag [#allocation5], 1
    %22 = vsyncpa %s21, 0
    %23 = vsyncpa [#allocation13], 0
    %s24 = scalar_lea.sflag [#allocation13], 1
    %25 = vsyncpa %s24, 0
    loop: start=0, step=1, limit=4
    $region2: #{tpu_custom_call.1} parent=1 // loop_pre_header
      _
    $region3: #{tpu_custom_call.1} parent=1 // loop_header
      %s27 = sphi 0, %s31
      %p28 = scmp.ge.s32.totalorder %s27, 4
      %s34 = sphi 0, %s46
      %s35 = sphi 0, %s42
      %s36 = sphi 0, %s34
      %s37 = sphi 0, %s35
      %s38 = sphi 0, %s36
      %s39 = sphi 0, %s37
      %s51 = sphi 0, %s53
      %s54 = sphi 0, %s51
      %s55 = sphi 0, %s54
      %s71 = sphi 0, %s55
      %s77 = sphi 0, %s79
      %s80 = sphi 0, %s77
      %s81 = sphi 0, %s80
      %s97 = sphi 0, %s81
      %s103 = sphi 0, %s105
      %s106 = sphi 0, %s103
      %s107 = sphi 0, %s106
      %s123 = sphi 0, %s107
      %s131 = sphi 0, %s133
      %s134 = sphi 0, %s131
      %s135 = sphi 0, %s134
      %s151 = sphi 0, %s135
      %s155 = sphi 0, %s155
      %s157 = sphi 0, %s155
      %s158 = sphi 0, %s157
      %s172 = sphi 0, %s158
      %s176 = sphi 0, %s176
      %s178 = sphi 0, %s176
      %s179 = sphi 0, %s178
      %s193 = sphi 0, %s179
      %s201 = sphi 0, %s203
      %s204 = sphi 0, %s201
      %s205 = sphi 0, %s204
      %s221 = sphi 0, %s205
      %s229 = sphi 0, %s231
      %s232 = sphi 0, %s229
      %s233 = sphi 0, %s232
      %s249 = sphi 0, %s233
    $region4: #{tpu_custom_call.1} parent=1 // loop_header_branch
      %30 = sbr.rel (%p28) target = $region8
    $region5: #{tpu_custom_call.1} parent=1 // loop_body
      %s32 = ssub.s32 %s27, 1
      %s33 = ssub.s32 %s27, 2
      %s40 = sadd.s32 1, %s35
      %p41 = scmp.ge.s32.totalorder %s40, 1
      %s42 = scalar_select %p41, 0, %s40
      %s43 = sadd.s32 1, %s34
      %s44 = scalar_select %p41, %s43, %s34
      %p45 = scmp.ge.s32.totalorder %s44, 2
      %s46 = scalar_select %p45, 0, %s44
      %s47 = ssub.s32 %s34, %s46
      %s48 = ssub.s32 %s35, %s42
      %s49 = sor.u32 %s47, %s48
      %p50 = scmp.eq.s32.totalorder %s49, 0
      %s52 = sadd.s32 %s51, 1
      %s53 = scalar_select %p50, %s51, %s52
      %p56 = pneg %p50
      %p57 = scmp.eq.s32.totalorder %s27, 1
      %p58 = por %p56, %p57
      %p59 = scmp.ne.s32.totalorder %s51, %s54
      %p60 = scmp.eq.s32.totalorder %s27, 0
      %p61 = por %p59, %p60
      %p62 = scmp.ne.s32.totalorder %s51, %s54
      %p63 = scmp.eq.s32.totalorder %s32, 1
      %p64 = por %p62, %p63
      %p65 = scmp.ne.s32.totalorder %s54, %s55
      %p66 = scmp.eq.s32.totalorder %s32, 0
      %p67 = por %p65, %p66
      %p68 = scmp.ne.s32.totalorder %s54, %s55
      %p69 = scmp.eq.s32.totalorder %s33, 1
      %p70 = por %p68, %p69
      %p72 = scmp.ne.s32.totalorder %s55, %s71
      %p73 = scmp.eq.s32.totalorder %s33, 0
      %p74 = por %p72, %p73
      %s75 = ssub.s32 %s34, %s46
      %p76 = scmp.eq.s32.totalorder %s75, 0
      %s78 = sadd.s32 %s77, 1
      %s79 = scalar_select %p76, %s77, %s78
      %p82 = pneg %p76
      %p83 = scmp.eq.s32.totalorder %s27, 1
      %p84 = por %p82, %p83
      %p85 = scmp.ne.s32.totalorder %s77, %s80
      %p86 = scmp.eq.s32.totalorder %s27, 0
      %p87 = por %p85, %p86
      %p88 = scmp.ne.s32.totalorder %s77, %s80
      %p89 = scmp.eq.s32.totalorder %s32, 1
      %p90 = por %p88, %p89
      %p91 = scmp.ne.s32.totalorder %s80, %s81
      %p92 = scmp.eq.s32.totalorder %s32, 0
      %p93 = por %p91, %p92
      %p94 = scmp.ne.s32.totalorder %s80, %s81
      %p95 = scmp.eq.s32.totalorder %s33, 1
      %p96 = por %p94, %p95
      %p98 = scmp.ne.s32.totalorder %s81, %s97
      %p99 = scmp.eq.s32.totalorder %s33, 0
      %p100 = por %p98, %p99
      %s101 = ssub.s32 %s34, %s46
      %p102 = scmp.eq.s32.totalorder %s101, 0
      %s104 = sadd.s32 %s103, 1
      %s105 = scalar_select %p102, %s103, %s104
      %p108 = pneg %p102
      %p109 = scmp.eq.s32.totalorder %s27, 1
      %p110 = por %p108, %p109
      %p111 = scmp.ne.s32.totalorder %s103, %s106
      %p112 = scmp.eq.s32.totalorder %s27, 0
      %p113 = por %p111, %p112
      %p114 = scmp.ne.s32.totalorder %s103, %s106
      %p115 = scmp.eq.s32.totalorder %s32, 1
      %p116 = por %p114, %p115
      %p117 = scmp.ne.s32.totalorder %s106, %s107
      %p118 = scmp.eq.s32.totalorder %s32, 0
      %p119 = por %p117, %p118
      %p120 = scmp.ne.s32.totalorder %s106, %s107
      %p121 = scmp.eq.s32.totalorder %s33, 1
      %p122 = por %p120, %p121
      %p124 = scmp.ne.s32.totalorder %s107, %s123
      %p125 = scmp.eq.s32.totalorder %s33, 0
      %p126 = por %p124, %p125
      %s127 = ssub.s32 %s34, %s46
      %s128 = ssub.s32 %s35, %s42
      %s129 = sor.u32 %s127, %s128
      %p130 = scmp.eq.s32.totalorder %s129, 0
      %s132 = sadd.s32 %s131, 1
      %s133 = scalar_select %p130, %s131, %s132
      %p136 = pneg %p130
      %p137 = scmp.eq.s32.totalorder %s27, 1
      %p138 = por %p136, %p137
      %p139 = scmp.ne.s32.totalorder %s131, %s134
      %p140 = scmp.eq.s32.totalorder %s27, 0
      %p141 = por %p139, %p140
      %p142 = scmp.ne.s32.totalorder %s131, %s134
      %p143 = scmp.eq.s32.totalorder %s32, 1
      %p144 = por %p142, %p143
      %p145 = scmp.ne.s32.totalorder %s134, %s135
      %p146 = scmp.eq.s32.totalorder %s32, 0
      %p147 = por %p145, %p146
      %p148 = scmp.ne.s32.totalorder %s134, %s135
      %p149 = scmp.eq.s32.totalorder %s33, 1
      %p150 = por %p148, %p149
      %p152 = scmp.ne.s32.totalorder %s135, %s151
      %p153 = scmp.eq.s32.totalorder %s33, 0
      %p154 = por %p152, %p153
      %s156 = sadd.s32 %s155, 1
      %p159 = scmp.eq.s32.totalorder %s27, 1
      %p160 = scmp.ne.s32.totalorder %s155, %s157
      %p161 = scmp.eq.s32.totalorder %s27, 0
      %p162 = por %p160, %p161
      %p163 = scmp.ne.s32.totalorder %s155, %s157
      %p164 = scmp.eq.s32.totalorder %s32, 1
      %p165 = por %p163, %p164
      %p166 = scmp.ne.s32.totalorder %s157, %s158
      %p167 = scmp.eq.s32.totalorder %s32, 0
      %p168 = por %p166, %p167
      %p169 = scmp.ne.s32.totalorder %s157, %s158
      %p170 = scmp.eq.s32.totalorder %s33, 1
      %p171 = por %p169, %p170
      %p173 = scmp.ne.s32.totalorder %s158, %s172
      %p174 = scmp.eq.s32.totalorder %s33, 0
      %p175 = por %p173, %p174
      %s177 = sadd.s32 %s176, 1
      %p180 = scmp.eq.s32.totalorder %s27, 1
      %p181 = scmp.ne.s32.totalorder %s176, %s178
      %p182 = scmp.eq.s32.totalorder %s27, 0
      %p183 = por %p181, %p182
      %p184 = scmp.ne.s32.totalorder %s176, %s178
      %p185 = scmp.eq.s32.totalorder %s32, 1
      %p186 = por %p184, %p185
      %p187 = scmp.ne.s32.totalorder %s178, %s179
      %p188 = scmp.eq.s32.totalorder %s32, 0
      %p189 = por %p187, %p188
      %p190 = scmp.ne.s32.totalorder %s178, %s179
      %p191 = scmp.eq.s32.totalorder %s33, 1
      %p192 = por %p190, %p191
      %p194 = scmp.ne.s32.totalorder %s179, %s193
      %p195 = scmp.eq.s32.totalorder %s33, 0
      %p196 = por %p194, %p195
      %s197 = ssub.s32 %s34, %s46
      %s198 = ssub.s32 %s35, %s42
      %s199 = sor.u32 %s197, %s198
      %p200 = scmp.eq.s32.totalorder %s199, 0
      %s202 = sadd.s32 %s201, 1
      %s203 = scalar_select %p200, %s201, %s202
      %p206 = pneg %p200
      %p207 = scmp.eq.s32.totalorder %s27, 1
      %p208 = por %p206, %p207
      %p209 = scmp.ne.s32.totalorder %s201, %s204
      %p210 = scmp.eq.s32.totalorder %s27, 0
      %p211 = por %p209, %p210
      %p212 = scmp.ne.s32.totalorder %s201, %s204
      %p213 = scmp.eq.s32.totalorder %s32, 1
      %p214 = por %p212, %p213
      %p215 = scmp.ne.s32.totalorder %s204, %s205
      %p216 = scmp.eq.s32.totalorder %s32, 0
      %p217 = por %p215, %p216
      %p218 = scmp.ne.s32.totalorder %s204, %s205
      %p219 = scmp.eq.s32.totalorder %s33, 1
      %p220 = por %p218, %p219
      %p222 = scmp.ne.s32.totalorder %s205, %s221
      %p223 = scmp.eq.s32.totalorder %s33, 0
      %p224 = por %p222, %p223
      %s225 = ssub.s32 %s34, %s46
      %s226 = ssub.s32 %s35, %s42
      %s227 = sor.u32 %s225, %s226
      %p228 = scmp.eq.s32.totalorder %s227, 0
      %s230 = sadd.s32 %s229, 1
      %s231 = scalar_select %p228, %s229, %s230
      %p234 = pneg %p228
      %p235 = scmp.eq.s32.totalorder %s27, 1
      %p236 = por %p234, %p235
      %p237 = scmp.ne.s32.totalorder %s229, %s232
      %p238 = scmp.eq.s32.totalorder %s27, 0
      %p239 = por %p237, %p238
      %p240 = scmp.ne.s32.totalorder %s229, %s232
      %p241 = scmp.eq.s32.totalorder %s32, 1
      %p242 = por %p240, %p241
      %p243 = scmp.ne.s32.totalorder %s232, %s233
      %p244 = scmp.eq.s32.totalorder %s32, 0
      %p245 = por %p243, %p244
      %p246 = scmp.ne.s32.totalorder %s232, %s233
      %p247 = scmp.eq.s32.totalorder %s33, 1
      %p248 = por %p246, %p247
      %p250 = scmp.ne.s32.totalorder %s233, %s249
      %p251 = scmp.eq.s32.totalorder %s33, 0
      %p252 = por %p250, %p251
      %p253 = scmp.le.s32.totalorder 1, %s27
      %p254 = scmp.lt.s32.totalorder %s27, 3
      %p255 = pnand %p253, %p254
      %p256 = pneg %p255
      // Predicated region
      $region9: #{tpu_custom_call.1} parent=5 // pred_check
        _
      $region10: #{tpu_custom_call.1} parent=5 // pred_check_branch
        %258 = sbr.rel (%p255) target = $region12
      $region11: #{tpu_custom_call.1} parent=5 // pred_region
        %s259 = ssub.s32 %s27, 1
        // Predicated region
        $region13: #{tpu_custom_call.1} parent=11 // pred_check
          %p260 = pneg %p168
        $region14: #{tpu_custom_call.1} parent=11 // pred_check_branch
          %262 = sbr.rel (%p260) target = $region16
        $region15: #{tpu_custom_call.1} parent=11 // pred_region
          %s264 = ssub.s32 256, 256
          %265 = vsyncadd [#allocation10], %s264
          %s266 = sshll.u32 [#allocation9], 4
          %s267 = int_to_ptr.vmem [resolvable:$true] %s266
          %272 = dma.hbm_to_vmem [thread:$0]  %s4, 256, %s267, [#allocation10], 64, 64, 4
        $region16: #{tpu_custom_call.1} parent=11 // pred_fallthru
          _
        // Predicated region
        $region17: #{tpu_custom_call.1} parent=11 // pred_check
          %p273 = pneg %p189
        $region18: #{tpu_custom_call.1} parent=11 // pred_check_branch
          %275 = sbr.rel (%p273) target = $region20
        $region19: #{tpu_custom_call.1} parent=11 // pred_region
          _
        $region20: #{tpu_custom_call.1} parent=11 // pred_fallthru
          _
      $region12: #{tpu_custom_call.1} parent=5 // pred_fallthru
        _
      %p276 = scmp.lt.s32.totalorder %s27, 2
      // Predicated region
      $region21: #{tpu_custom_call.1} parent=5 // pred_check
        %p277 = pneg %p276
      $region22: #{tpu_custom_call.1} parent=5 // pred_check_branch
        %279 = sbr.rel (%p277) target = $region24
      $region23: #{tpu_custom_call.1} parent=5 // pred_region
        // Predicated region
        $region25: #{tpu_custom_call.1} parent=23 // pred_check
          %p280 = pneg %p61
        $region26: #{tpu_custom_call.1} parent=23 // pred_check_branch
          %282 = sbr.rel (%p280) target = $region28
        $region27: #{tpu_custom_call.1} parent=23 // pred_region
          %s283 = sand.u32 %s51, 1
          %s284 = scalar_lea.sflag [#allocation4], %s283
          %s285 = sand.u32 %s51, 1
          %s286 = smul.addr %s285, 16
          %s287 = scalar_lea.vmem [#allocation3], %s286
          %s289 = ssub.s32 256, 256
          %290 = vsyncadd %s284, %s289
          %s291 = smul.addr %s34, 4
          %s292 = sadd.s32 %s35, %s291
          %s293 = smul.addr %s292, 64
          %s294 = scalar_lea.hbm %s0, %s293
          %s295 = sshll.u32 %s287, 4
          %s296 = int_to_ptr.vmem [resolvable:$true] %s295
          %301 = dma.hbm_to_vmem [thread:$0]  %s294, 256, %s296, %s284, 64, 64, 4
        $region28: #{tpu_custom_call.1} parent=23 // pred_fallthru
          _
        // Predicated region
        $region29: #{tpu_custom_call.1} parent=23 // pred_check
          %p302 = pneg %p87
        $region30: #{tpu_custom_call.1} parent=23 // pred_check_branch
          %304 = sbr.rel (%p302) target = $region32
        $region31: #{tpu_custom_call.1} parent=23 // pred_region
          %s305 = sand.u32 %s27, 1
          %s306 = scalar_lea.sflag [#allocation7], %s305
          %s307 = sand.u32 %s77, 1
          %s308 = smul.addr %s307, 16
          %s309 = scalar_lea.vmem [#allocation6], %s308
          %s311 = ssub.s32 256, 256
          %312 = vsyncadd %s306, %s311
          %s313 = smul.addr %s34, 4
          %s314 = smul.addr %s313, 64
          %s315 = scalar_lea.hbm %s1, %s314
          %s316 = sshll.u32 %s309, 4
          %s317 = int_to_ptr.vmem [resolvable:$true] %s316
          %322 = dma.hbm_to_vmem [thread:$0]  %s315, 256, %s317, %s306, 64, 64, 4
        $region32: #{tpu_custom_call.1} parent=23 // pred_fallthru
          _
        // Predicated region
        $region33: #{tpu_custom_call.1} parent=23 // pred_check
          %p323 = pneg %p113
        $region34: #{tpu_custom_call.1} parent=23 // pred_check_branch
          %325 = sbr.rel (%p323) target = $region36
        $region35: #{tpu_custom_call.1} parent=23 // pred_region
          %s326 = sand.u32 %s27, 1
          %s327 = scalar_lea.sflag [#allocation7], %s326
          %s328 = sand.u32 %s103, 1
          %s329 = smul.addr %s328, 16
          %s330 = scalar_lea.vmem [#allocation8], %s329
          %s332 = ssub.s32 256, 256
          %333 = vsyncadd %s327, %s332
          %s334 = smul.addr %s34, 4
          %s335 = smul.addr %s334, 64
          %s336 = scalar_lea.hbm %s2, %s335
          %s337 = sshll.u32 %s330, 4
          %s338 = int_to_ptr.vmem [resolvable:$true] %s337
          %343 = dma.hbm_to_vmem [thread:$0]  %s336, 256, %s338, %s327, 64, 64, 4
        $region36: #{tpu_custom_call.1} parent=23 // pred_fallthru
          _
        // Predicated region
        $region37: #{tpu_custom_call.1} parent=23 // pred_check
          %p344 = pneg %p141
        $region38: #{tpu_custom_call.1} parent=23 // pred_check_branch
          %346 = sbr.rel (%p344) target = $region40
        $region39: #{tpu_custom_call.1} parent=23 // pred_region
          %p347 = scmp.lt.s32.totalorder %s34, 1
          %s348 = scalar_select %p347, %s34, 1
          %p349 = scmp.lt.s32.totalorder %s35, 0
          %s350 = scalar_select %p349, %s35, 0
          %s351 = sadd.s32 %s350, %s348
          %s352 = smul.addr %s351, 2
          %s353 = scalar_lea.vmem %s3, %s352
        $region40: #{tpu_custom_call.1} parent=23 // pred_fallthru
          _
      $region24: #{tpu_custom_call.1} parent=5 // pred_fallthru
        _
      %p354 = scmp.le.s32.totalorder 1, %s27
      %p355 = scmp.lt.s32.totalorder %s27, 3
      %p356 = pnand %p354, %p355
      %p357 = pneg %p356
      // Predicated region
      $region41: #{tpu_custom_call.1} parent=5 // pred_check
        _
      $region42: #{tpu_custom_call.1} parent=5 // pred_check_branch
        %359 = sbr.rel (%p356) target = $region44
      $region43: #{tpu_custom_call.1} parent=5 // pred_region
        %s360 = ssub.s32 %s27, 1
        %s361 = sand.u32 %s54, 1
        %s362 = scalar_lea.sflag [#allocation4], %s361
        %s363 = sand.u32 %s54, 1
        %s364 = smul.addr %s363, 16
        %s365 = scalar_lea.vmem [#allocation3], %s364
        // Predicated region
        $region45: #{tpu_custom_call.1} parent=43 // pred_check
          %p366 = pneg %p67
        $region46: #{tpu_custom_call.1} parent=43 // pred_check_branch
          %368 = sbr.rel (%p366) target = $region48
        $region47: #{tpu_custom_call.1} parent=43 // pred_region
          %369 = dma.done %s362, 256
        $region48: #{tpu_custom_call.1} parent=43 // pred_fallthru
          _
        %s370 = sand.u32 %s32, 1
        %s371 = scalar_lea.sflag [#allocation7], %s370
        %s372 = sand.u32 %s80, 1
        %s373 = smul.addr %s372, 16
        %s374 = scalar_lea.vmem [#allocation6], %s373
        // Predicated region
        $region49: #{tpu_custom_call.1} parent=43 // pred_check
          %p375 = pneg %p93
        $region50: #{tpu_custom_call.1} parent=43 // pred_check_branch
          %377 = sbr.rel (%p375) target = $region52
        $region51: #{tpu_custom_call.1} parent=43 // pred_region
          %378 = dma.done %s371, 256
        $region52: #{tpu_custom_call.1} parent=43 // pred_fallthru
          _
        %s379 = sand.u32 %s32, 1
        %s380 = scalar_lea.sflag [#allocation7], %s379
        %s381 = sand.u32 %s106, 1
        %s382 = smul.addr %s381, 16
        %s383 = scalar_lea.vmem [#allocation8], %s382
        // Predicated region
        $region53: #{tpu_custom_call.1} parent=43 // pred_check
          %p384 = pneg %p119
        $region54: #{tpu_custom_call.1} parent=43 // pred_check_branch
          %386 = sbr.rel (%p384) target = $region56
        $region55: #{tpu_custom_call.1} parent=43 // pred_region
          %387 = dma.done %s380, 256
        $region56: #{tpu_custom_call.1} parent=43 // pred_fallthru
          _
        // Predicated region
        $region57: #{tpu_custom_call.1} parent=43 // pred_check
          %p388 = pneg %p168
        $region58: #{tpu_custom_call.1} parent=43 // pred_check_branch
          %390 = sbr.rel (%p388) target = $region60
        $region59: #{tpu_custom_call.1} parent=43 // pred_region
          %391 = dma.done [#allocation10], 256
        $region60: #{tpu_custom_call.1} parent=43 // pred_fallthru
          _
        %s392 = sand.u32 %s54, 1
        %s393 = scalar_lea.sflag [#allocation4], %s392
        %s394 = sand.u32 %s54, 1
        %s395 = smul.addr %s394, 16
        %s396 = scalar_lea.vmem [#allocation3], %s395
        %p397 = pneg %p67
        %p398 = pneg %p64
        %s399 = sand.u32 %s32, 1
        %s400 = scalar_lea.sflag [#allocation7], %s399
        %s401 = sand.u32 %s80, 1
        %s402 = smul.addr %s401, 16
        %s403 = scalar_lea.vmem [#allocation6], %s402
        %p404 = pneg %p93
        %p405 = pneg %p90
        %s406 = sand.u32 %s32, 1
        %s407 = scalar_lea.sflag [#allocation7], %s406
        %s408 = sand.u32 %s106, 1
        %s409 = smul.addr %s408, 16
        %s410 = scalar_lea.vmem [#allocation8], %s409
        %p411 = pneg %p119
        %p412 = pneg %p116
        %p413 = scmp.lt.s32.totalorder %s36, 1
        %s414 = scalar_select %p413, %s36, 1
        %p415 = scmp.lt.s32.totalorder %s37, 0
        %s416 = scalar_select %p415, %s37, 0
        %s417 = sadd.s32 %s416, %s414
        %s418 = smul.addr %s417, 2
        %s419 = scalar_lea.vmem %s3, %s418
        %p420 = pneg %p147
        %p421 = pneg %p144
        %p422 = pneg %p168
        %p423 = pneg %p165
        %p424 = pneg %p189
        %p425 = pneg %p186
        %p426 = pneg %p217
        %p427 = pneg %p214
        %s428 = sand.u32 %s204, 1
        %s429 = scalar_lea.sflag [#allocation5], %s428
        %s430 = sand.u32 %s204, 1
        %s431 = smul.addr %s430, 16
        %s432 = scalar_lea.vmem [#allocation11], %s431
        %p433 = pneg %p245
        %p434 = pneg %p242
        %s435 = sand.u32 %s232, 1
        %s436 = scalar_lea.sflag [#allocation13], %s435
        %s437 = sand.u32 %s232, 1
        %s438 = smul.addr %s437, 8
        %s439 = scalar_lea.vmem [#allocation12], %s438
        %p440 = scmp.lt.s32.totalorder %s36, 1
        %s441 = scalar_select %p440, %s36, 1
        %p442 = scmp.lt.s32.totalorder %s37, 0
        %s443 = scalar_select %p442, %s37, 0
        %s444 = sadd.s32 %s443, %s441
        %s445 = smul.addr %s444, 2
        %s446 = scalar_lea.vmem %s3, %s445
        %v451 = vld [vmem:[%s446] sm:$0x3]
        %vm452 = vnez %v451
        %v453 = vld [vmem:[%s365] sm:$0xf]
        %v454 = vmul.bf16 %v453, 1052065461
        %v455 = vld [vmem:[%s374] sm:$0xf]
        %vm456 = vcmask 64512
        %v458 = vsel %vm456, %v454, 0
        %vm460 = vcmask 1043456
        %v462 = vsel %vm460, %v455, 0
        %464 = vmatprep.subr.bf16.mxu0 0
        %465 = vmatpush1.bf16.msra.mxu0 %v462
        %466 = vmatprep.subr.bf16.mxu0 0
        %467 = vmatpush1.bf16.msra.mxu0 0
        %468 = vmatprep.subr.bf16.mxu0 0
        %469 = vmatpush1.bf16.msra.mxu0 0
        %470 = vmatprep.subr.bf16.mxu0 0
        %471 = vmatpush1.bf16.msra.mxu0 0
        %472 = vmatprep.subr.bf16.mxu0 0
        %473 = vmatpush1.bf16.msra.mxu0 0
        %474 = vmatprep.subr.bf16.mxu0 0
        %475 = vmatpush1.bf16.msra.mxu0 0
        %476 = vmatprep.subr.bf16.mxu0 0
        %477 = vmatpush1.bf16.msra.mxu0 0
        %478 = vmatprep.subr.bf16.mxu0 0
        %479 = vmatpush1.bf16.msra.mxu0 0
        %480 = vmatprep.subr.bf16.mxu0 0
        %481 = vmatpush1.bf16.msra.mxu0 0
        %482 = vmatprep.subr.bf16.mxu0 0
        %483 = vmatpush1.bf16.msra.mxu0 0
        %484 = vmatprep.subr.bf16.mxu0 0
        %485 = vmatpush1.bf16.msra.mxu0 0
        %486 = vmatprep.subr.bf16.mxu0 0
        %487 = vmatpush1.bf16.msra.mxu0 0
        %488 = vmatprep.subr.bf16.mxu0 0
        %489 = vmatpush1.bf16.msra.mxu0 0
        %490 = vmatprep.subr.bf16.mxu0 0
        %491 = vmatpush1.bf16.msra.mxu0 0
        %492 = vmatprep.subr.bf16.mxu0 0
        %493 = vmatpush1.bf16.msra.mxu0 0
        %494 = vmatprep.subr.bf16.mxu0 0
        %495 = vmatpush1.bf16.msra.mxu0 0
        %496 = vmatprep.mubr.bf16.mxu0 0
        %497 = vmatmul.mubr.bf16.gmra.mrb[0].mxu0 %v458
        %v498 = vpop.f32.mrb[0].mxu0
        %v499 = vadd.f32 0.0, %v498
        %v500 = vpop.f32.mrb[0].mxu0
        %v501 = vpop.f32.mrb[0].mxu0
        %v502 = vpop.f32.mrb[0].mxu0
        %503 = vdwg.mxu0
        %v504 = vsel %vm452, 16843009, 0
        %v505 = vunpack.c.0.s8 %v504
        %vm506 = vcmp.ne.s32.totalorder %v505, 0
        %v507 = vsel %vm506, %v499, -inf
        %v508 = vsel %vm456, %v507, -inf
        %509 = vmax.xlane.f32.xlu0 %v508
        %v510 = vpop.xlane.xlu0 %509
        %v511 = vsub.f32 %v507, %v510
        %v512 = vmul.f32 %v511, 1.442695
        %v513 = vpow.pop %v512
        %v514 = vsel %vm456, %v513, 0.0
        %515 = vadd.xlane.f32.xlu0 %v514
        %v516 = vpop.xlane.xlu0 %515
        %v517 = vrcp.pop %v516
        %v518 = vmul.f32 %v513, %v517
        %v519 = vpack.c.bf16 %v518, %v518
        %vm520 = vcmask 60416
        %521 = vst.msk [vmem:[%s432] sm:$0xf] %vm520, %v519
        %v522 = vld [vmem:[%s383] sm:$0xf]
        %v524 = vsel %vm456, %v519, 0
        %v527 = vsel %vm460, %v522, 0
        %529 = vmatprep.subr.bf16.mxu0 0
        %530 = vmatpush1.bf16.msra.mxu0 %v527
        %531 = vmatprep.subr.bf16.mxu0 0
        %532 = vmatpush1.bf16.msra.mxu0 0
        %533 = vmatprep.subr.bf16.mxu0 0
        %534 = vmatpush1.bf16.msra.mxu0 0
        %535 = vmatprep.subr.bf16.mxu0 0
        %536 = vmatpush1.bf16.msra.mxu0 0
        %537 = vmatprep.subr.bf16.mxu0 0
        %538 = vmatpush1.bf16.msra.mxu0 0
        %539 = vmatprep.subr.bf16.mxu0 0
        %540 = vmatpush1.bf16.msra.mxu0 0
        %541 = vmatprep.subr.bf16.mxu0 0
        %542 = vmatpush1.bf16.msra.mxu0 0
        %543 = vmatprep.subr.bf16.mxu0 0
        %544 = vmatpush1.bf16.msra.mxu0 0
        %545 = vmatprep.subr.bf16.mxu0 0
        %546 = vmatpush1.bf16.msra.mxu0 0
        %547 = vmatprep.subr.bf16.mxu0 0
        %548 = vmatpush1.bf16.msra.mxu0 0
        %549 = vmatprep.subr.bf16.mxu0 0
        %550 = vmatpush1.bf16.msra.mxu0 0
        %551 = vmatprep.subr.bf16.mxu0 0
        %552 = vmatpush1.bf16.msra.mxu0 0
        %553 = vmatprep.subr.bf16.mxu0 0
        %554 = vmatpush1.bf16.msra.mxu0 0
        %555 = vmatprep.subr.bf16.mxu0 0
        %556 = vmatpush1.bf16.msra.mxu0 0
        %557 = vmatprep.subr.bf16.mxu0 0
        %558 = vmatpush1.bf16.msra.mxu0 0
        %559 = vmatprep.subr.bf16.mxu0 0
        %560 = vmatpush1.bf16.msra.mxu0 0
        %561 = vmatprep.mubr.bf16.mxu0 0
        %562 = vmatmul.mubr.bf16.gmra.mrb[0].mxu0 %v524
        %v563 = vpop.f32.mrb[0].mxu0
        %v564 = vadd.f32 0.0, %v563
        %v565 = vpop.f32.mrb[0].mxu0
        %v566 = vpop.f32.mrb[0].mxu0
        %v567 = vpop.f32.mrb[0].mxu0
        %568 = vdwg.mxu0
        %569 = vst.msk [vmem:[#allocation2] sm:$0xff] %vm456, %v564
        %s570 = scalar_lea.vmem %s365, 4 [#allocation3]
        %v571 = vld [vmem:[%s570] sm:$0xf]
        %v572 = vmul.bf16 %v571, 1052065461
        %s573 = scalar_lea.vmem %s374, 4 [#allocation6]
        %v574 = vld [vmem:[%s573] sm:$0xf]
        %v576 = vsel %vm456, %v572, 0
        %v579 = vsel %vm460, %v574, 0
        %581 = vmatprep.subr.bf16.mxu0 0
        %582 = vmatpush1.bf16.msra.mxu0 %v579
        %583 = vmatprep.subr.bf16.mxu0 0
        %584 = vmatpush1.bf16.msra.mxu0 0
        %585 = vmatprep.subr.bf16.mxu0 0
        %586 = vmatpush1.bf16.msra.mxu0 0
        %587 = vmatprep.subr.bf16.mxu0 0
        %588 = vmatpush1.bf16.msra.mxu0 0
        %589 = vmatprep.subr.bf16.mxu0 0
        %590 = vmatpush1.bf16.msra.mxu0 0
        %591 = vmatprep.subr.bf16.mxu0 0
        %592 = vmatpush1.bf16.msra.mxu0 0
        %593 = vmatprep.subr.bf16.mxu0 0
        %594 = vmatpush1.bf16.msra.mxu0 0
        %595 = vmatprep.subr.bf16.mxu0 0
        %596 = vmatpush1.bf16.msra.mxu0 0
        %597 = vmatprep.subr.bf16.mxu0 0
        %598 = vmatpush1.bf16.msra.mxu0 0
        %599 = vmatprep.subr.bf16.mxu0 0
        %600 = vmatpush1.bf16.msra.mxu0 0
        %601 = vmatprep.subr.bf16.mxu0 0
        %602 = vmatpush1.bf16.msra.mxu0 0
        %603 = vmatprep.subr.bf16.mxu0 0
        %604 = vmatpush1.bf16.msra.mxu0 0
        %605 = vmatprep.subr.bf16.mxu0 0
        %606 = vmatpush1.bf16.msra.mxu0 0
        %607 = vmatprep.subr.bf16.mxu0 0
        %608 = vmatpush1.bf16.msra.mxu0 0
        %609 = vmatprep.subr.bf16.mxu0 0
        %610 = vmatpush1.bf16.msra.mxu0 0
        %611 = vmatprep.subr.bf16.mxu0 0
        %612 = vmatpush1.bf16.msra.mxu0 0
        %613 = vmatprep.mubr.bf16.mxu0 0
        %614 = vmatmul.mubr.bf16.gmra.mrb[0].mxu0 %v576
        %v615 = vpop.f32.mrb[0].mxu0
        %v616 = vadd.f32 0.0, %v615
        %v617 = vpop.f32.mrb[0].mxu0
        %v618 = vpop.f32.mrb[0].mxu0
        %v619 = vpop.f32.mrb[0].mxu0
        %620 = vdwg.mxu0
        %v621 = vsel %vm506, %v616, -inf
        %v622 = vsel %vm456, %v621, -inf
        %623 = vmax.xlane.f32.xlu0 %v622
        %v624 = vpop.xlane.xlu0 %623
        %v625 = vsub.f32 %v621, %v624
        %v626 = vmul.f32 %v625, 1.442695
        %v627 = vpow.pop %v626
        %v628 = vsel %vm456, %v627, 0.0
        %629 = vadd.xlane.f32.xlu0 %v628
        %v630 = vpop.xlane.xlu0 %629
        %v631 = vrcp.pop %v630
        %v632 = vmul.f32 %v627, %v631
        %v633 = vpack.c.bf16 %v632, %v632
        %s634 = scalar_lea.vmem %s432, 4 [#allocation11]
        %635 = vst.msk [vmem:[%s634] sm:$0xf] %vm520, %v633
        %s636 = scalar_lea.vmem %s383, 4 [#allocation8]
        %v637 = vld [vmem:[%s636] sm:$0xf]
        %v639 = vsel %vm456, %v633, 0
        %v642 = vsel %vm460, %v637, 0
        %644 = vmatprep.subr.bf16.mxu0 0
        %645 = vmatpush1.bf16.msra.mxu0 %v642
        %646 = vmatprep.subr.bf16.mxu0 0
        %647 = vmatpush1.bf16.msra.mxu0 0
        %648 = vmatprep.subr.bf16.mxu0 0
        %649 = vmatpush1.bf16.msra.mxu0 0
        %650 = vmatprep.subr.bf16.mxu0 0
        %651 = vmatpush1.bf16.msra.mxu0 0
        %652 = vmatprep.subr.bf16.mxu0 0
        %653 = vmatpush1.bf16.msra.mxu0 0
        %654 = vmatprep.subr.bf16.mxu0 0
        %655 = vmatpush1.bf16.msra.mxu0 0
        %656 = vmatprep.subr.bf16.mxu0 0
        %657 = vmatpush1.bf16.msra.mxu0 0
        %658 = vmatprep.subr.bf16.mxu0 0
        %659 = vmatpush1.bf16.msra.mxu0 0
        %660 = vmatprep.subr.bf16.mxu0 0
        %661 = vmatpush1.bf16.msra.mxu0 0
        %662 = vmatprep.subr.bf16.mxu0 0
        %663 = vmatpush1.bf16.msra.mxu0 0
        %664 = vmatprep.subr.bf16.mxu0 0
        %665 = vmatpush1.bf16.msra.mxu0 0
        %666 = vmatprep.subr.bf16.mxu0 0
        %667 = vmatpush1.bf16.msra.mxu0 0
        %668 = vmatprep.subr.bf16.mxu0 0
        %669 = vmatpush1.bf16.msra.mxu0 0
        %670 = vmatprep.subr.bf16.mxu0 0
        %671 = vmatpush1.bf16.msra.mxu0 0
        %672 = vmatprep.subr.bf16.mxu0 0
        %673 = vmatpush1.bf16.msra.mxu0 0
        %674 = vmatprep.subr.bf16.mxu0 0
        %675 = vmatpush1.bf16.msra.mxu0 0
        %676 = vmatprep.mubr.bf16.mxu0 0
        %677 = vmatmul.mubr.bf16.gmra.mrb[0].mxu0 %v639
        %v678 = vpop.f32.mrb[0].mxu0
        %v679 = vadd.f32 0.0, %v678
        %v680 = vpop.f32.mrb[0].mxu0
        %v681 = vpop.f32.mrb[0].mxu0
        %v682 = vpop.f32.mrb[0].mxu0
        %683 = vdwg.mxu0
        %685 = vrot.lane.b32.xlu0 %v679, 8
        %v686 = vpop.permute.xlu0 %685
        %vm688 = vcmask 130112
        %689 = vst.msk [vmem:[#allocation2] sm:$0xff] %vm688, %v686
        %s690 = scalar_lea.vmem %s365, 8 [#allocation3]
        %v691 = vld [vmem:[%s690] sm:$0xf]
        %v692 = vmul.bf16 %v691, 1052065461
        %s693 = scalar_lea.vmem %s374, 8 [#allocation6]
        %v694 = vld [vmem:[%s693] sm:$0xf]
        %v696 = vsel %vm456, %v692, 0
        %v699 = vsel %vm460, %v694, 0
        %701 = vmatprep.subr.bf16.mxu0 0
        %702 = vmatpush1.bf16.msra.mxu0 %v699
        %703 = vmatprep.subr.bf16.mxu0 0
        %704 = vmatpush1.bf16.msra.mxu0 0
        %705 = vmatprep.subr.bf16.mxu0 0
        %706 = vmatpush1.bf16.msra.mxu0 0
        %707 = vmatprep.subr.bf16.mxu0 0
        %708 = vmatpush1.bf16.msra.mxu0 0
        %709 = vmatprep.subr.bf16.mxu0 0
        %710 = vmatpush1.bf16.msra.mxu0 0
        %711 = vmatprep.subr.bf16.mxu0 0
        %712 = vmatpush1.bf16.msra.mxu0 0
        %713 = vmatprep.subr.bf16.mxu0 0
        %714 = vmatpush1.bf16.msra.mxu0 0
        %715 = vmatprep.subr.bf16.mxu0 0
        %716 = vmatpush1.bf16.msra.mxu0 0
        %717 = vmatprep.subr.bf16.mxu0 0
        %718 = vmatpush1.bf16.msra.mxu0 0
        %719 = vmatprep.subr.bf16.mxu0 0
        %720 = vmatpush1.bf16.msra.mxu0 0
        %721 = vmatprep.subr.bf16.mxu0 0
        %722 = vmatpush1.bf16.msra.mxu0 0
        %723 = vmatprep.subr.bf16.mxu0 0
        %724 = vmatpush1.bf16.msra.mxu0 0
        %725 = vmatprep.subr.bf16.mxu0 0
        %726 = vmatpush1.bf16.msra.mxu0 0
        %727 = vmatprep.subr.bf16.mxu0 0
        %728 = vmatpush1.bf16.msra.mxu0 0
        %729 = vmatprep.subr.bf16.mxu0 0
        %730 = vmatpush1.bf16.msra.mxu0 0
        %731 = vmatprep.subr.bf16.mxu0 0
        %732 = vmatpush1.bf16.msra.mxu0 0
        %733 = vmatprep.mubr.bf16.mxu0 0
        %734 = vmatmul.mubr.bf16.gmra.mrb[0].mxu0 %v696
        %v735 = vpop.f32.mrb[0].mxu0
        %v736 = vadd.f32 0.0, %v735
        %v737 = vpop.f32.mrb[0].mxu0
        %v738 = vpop.f32.mrb[0].mxu0
        %v739 = vpop.f32.mrb[0].mxu0
        %740 = vdwg.mxu0
        %v741 = vsel %vm506, %v736, -inf
        %v742 = vsel %vm456, %v741, -inf
        %743 = vmax.xlane.f32.xlu0 %v742
        %v744 = vpop.xlane.xlu0 %743
        %v745 = vsub.f32 %v741, %v744
        %v746 = vmul.f32 %v745, 1.442695
        %v747 = vpow.pop %v746
        %v748 = vsel %vm456, %v747, 0.0
        %749 = vadd.xlane.f32.xlu0 %v748
        %v750 = vpop.xlane.xlu0 %749
        %v751 = vrcp.pop %v750
        %v752 = vmul.f32 %v747, %v751
        %v753 = vpack.c.bf16 %v752, %v752
        %s754 = scalar_lea.vmem %s432, 8 [#allocation11]
        %755 = vst.msk [vmem:[%s754] sm:$0xf] %vm520, %v753
        %s756 = scalar_lea.vmem %s383, 8 [#allocation8]
        %v757 = vld [vmem:[%s756] sm:$0xf]
        %v759 = vsel %vm456, %v753, 0
        %v762 = vsel %vm460, %v757, 0
        %764 = vmatprep.subr.bf16.mxu0 0
        %765 = vmatpush1.bf16.msra.mxu0 %v762
        %766 = vmatprep.subr.bf16.mxu0 0
        %767 = vmatpush1.bf16.msra.mxu0 0
        %768 = vmatprep.subr.bf16.mxu0 0
        %769 = vmatpush1.bf16.msra.mxu0 0
        %770 = vmatprep.subr.bf16.mxu0 0
        %771 = vmatpush1.bf16.msra.mxu0 0
        %772 = vmatprep.subr.bf16.mxu0 0
        %773 = vmatpush1.bf16.msra.mxu0 0
        %774 = vmatprep.subr.bf16.mxu0 0
        %775 = vmatpush1.bf16.msra.mxu0 0
        %776 = vmatprep.subr.bf16.mxu0 0
        %777 = vmatpush1.bf16.msra.mxu0 0
        %778 = vmatprep.subr.bf16.mxu0 0
        %779 = vmatpush1.bf16.msra.mxu0 0
        %780 = vmatprep.subr.bf16.mxu0 0
        %781 = vmatpush1.bf16.msra.mxu0 0
        %782 = vmatprep.subr.bf16.mxu0 0
        %783 = vmatpush1.bf16.msra.mxu0 0
        %784 = vmatprep.subr.bf16.mxu0 0
        %785 = vmatpush1.bf16.msra.mxu0 0
        %786 = vmatprep.subr.bf16.mxu0 0
        %787 = vmatpush1.bf16.msra.mxu0 0
        %788 = vmatprep.subr.bf16.mxu0 0
        %789 = vmatpush1.bf16.msra.mxu0 0
        %790 = vmatprep.subr.bf16.mxu0 0
        %791 = vmatpush1.bf16.msra.mxu0 0
        %792 = vmatprep.subr.bf16.mxu0 0
        %793 = vmatpush1.bf16.msra.mxu0 0
        %794 = vmatprep.subr.bf16.mxu0 0
        %795 = vmatpush1.bf16.msra.mxu0 0
        %796 = vmatprep.mubr.bf16.mxu0 0
        %797 = vmatmul.mubr.bf16.gmra.mrb[0].mxu0 %v759
        %v798 = vpop.f32.mrb[0].mxu0
        %v799 = vadd.f32 0.0, %v798
        %v800 = vpop.f32.mrb[0].mxu0
        %v801 = vpop.f32.mrb[0].mxu0
        %v802 = vpop.f32.mrb[0].mxu0
        %803 = vdwg.mxu0
        %805 = vrot.lane.b32.xlu0 %v799, 16
        %v806 = vpop.permute.xlu0 %805
        %vm808 = vcmask 195712
        %809 = vst.msk [vmem:[#allocation2] sm:$0xff] %vm808, %v806
        %s810 = scalar_lea.vmem %s365, 12 [#allocation3]
        %v811 = vld [vmem:[%s810] sm:$0xf]
        %v812 = vmul.bf16 %v811, 1052065461
        %s813 = scalar_lea.vmem %s374, 12 [#allocation6]
        %v814 = vld [vmem:[%s813] sm:$0xf]
        %v816 = vsel %vm456, %v812, 0
        %v819 = vsel %vm460, %v814, 0
        %821 = vmatprep.subr.bf16.mxu0 0
        %822 = vmatpush1.bf16.msra.mxu0 %v819
        %823 = vmatprep.subr.bf16.mxu0 0
        %824 = vmatpush1.bf16.msra.mxu0 0
        %825 = vmatprep.subr.bf16.mxu0 0
        %826 = vmatpush1.bf16.msra.mxu0 0
        %827 = vmatprep.subr.bf16.mxu0 0
        %828 = vmatpush1.bf16.msra.mxu0 0
        %829 = vmatprep.subr.bf16.mxu0 0
        %830 = vmatpush1.bf16.msra.mxu0 0
        %831 = vmatprep.subr.bf16.mxu0 0
        %832 = vmatpush1.bf16.msra.mxu0 0
        %833 = vmatprep.subr.bf16.mxu0 0
        %834 = vmatpush1.bf16.msra.mxu0 0
        %835 = vmatprep.subr.bf16.mxu0 0
        %836 = vmatpush1.bf16.msra.mxu0 0
        %837 = vmatprep.subr.bf16.mxu0 0
        %838 = vmatpush1.bf16.msra.mxu0 0
        %839 = vmatprep.subr.bf16.mxu0 0
        %840 = vmatpush1.bf16.msra.mxu0 0
        %841 = vmatprep.subr.bf16.mxu0 0
        %842 = vmatpush1.bf16.msra.mxu0 0
        %843 = vmatprep.subr.bf16.mxu0 0
        %844 = vmatpush1.bf16.msra.mxu0 0
        %845 = vmatprep.subr.bf16.mxu0 0
        %846 = vmatpush1.bf16.msra.mxu0 0
        %847 = vmatprep.subr.bf16.mxu0 0
        %848 = vmatpush1.bf16.msra.mxu0 0
        %849 = vmatprep.subr.bf16.mxu0 0
        %850 = vmatpush1.bf16.msra.mxu0 0
        %851 = vmatprep.subr.bf16.mxu0 0
        %852 = vmatpush1.bf16.msra.mxu0 0
        %853 = vmatprep.mubr.bf16.mxu0 0
        %854 = vmatmul.mubr.bf16.gmra.mrb[0].mxu0 %v816
        %v855 = vpop.f32.mrb[0].mxu0
        %v856 = vadd.f32 0.0, %v855
        %v857 = vpop.f32.mrb[0].mxu0
        %v858 = vpop.f32.mrb[0].mxu0
        %v859 = vpop.f32.mrb[0].mxu0
        %860 = vdwg.mxu0
        %v861 = vsel %vm506, %v856, -inf
        %v862 = vsel %vm456, %v861, -inf
        %863 = vmax.xlane.f32.xlu0 %v862
        %v864 = vpop.xlane.xlu0 %863
        %v865 = vsub.f32 %v861, %v864
        %v866 = vmul.f32 %v865, 1.442695
        %v867 = vpow.pop %v866
        %v868 = vsel %vm456, %v867, 0.0
        %869 = vadd.xlane.f32.xlu0 %v868
        %v870 = vpop.xlane.xlu0 %869
        %v871 = vrcp.pop %v870
        %v872 = vmul.f32 %v867, %v871
        %v873 = vpack.c.bf16 %v872, %v872
        %s874 = scalar_lea.vmem %s432, 12 [#allocation11]
        %875 = vst.msk [vmem:[%s874] sm:$0xf] %vm520, %v873
        %s876 = scalar_lea.vmem %s383, 12 [#allocation8]
        %v877 = vld [vmem:[%s876] sm:$0xf]
        %v879 = vsel %vm456, %v873, 0
        %v882 = vsel %vm460, %v877, 0
        %884 = vmatprep.subr.bf16.mxu0 0
        %885 = vmatpush1.bf16.msra.mxu0 %v882
        %886 = vmatprep.subr.bf16.mxu0 0
        %887 = vmatpush1.bf16.msra.mxu0 0
        %888 = vmatprep.subr.bf16.mxu0 0
        %889 = vmatpush1.bf16.msra.mxu0 0
        %890 = vmatprep.subr.bf16.mxu0 0
        %891 = vmatpush1.bf16.msra.mxu0 0
        %892 = vmatprep.subr.bf16.mxu0 0
        %893 = vmatpush1.bf16.msra.mxu0 0
        %894 = vmatprep.subr.bf16.mxu0 0
        %895 = vmatpush1.bf16.msra.mxu0 0
        %896 = vmatprep.subr.bf16.mxu0 0
        %897 = vmatpush1.bf16.msra.mxu0 0
        %898 = vmatprep.subr.bf16.mxu0 0
        %899 = vmatpush1.bf16.msra.mxu0 0
        %900 = vmatprep.subr.bf16.mxu0 0
        %901 = vmatpush1.bf16.msra.mxu0 0
        %902 = vmatprep.subr.bf16.mxu0 0
        %903 = vmatpush1.bf16.msra.mxu0 0
        %904 = vmatprep.subr.bf16.mxu0 0
        %905 = vmatpush1.bf16.msra.mxu0 0
        %906 = vmatprep.subr.bf16.mxu0 0
        %907 = vmatpush1.bf16.msra.mxu0 0
        %908 = vmatprep.subr.bf16.mxu0 0
        %909 = vmatpush1.bf16.msra.mxu0 0
        %910 = vmatprep.subr.bf16.mxu0 0
        %911 = vmatpush1.bf16.msra.mxu0 0
        %912 = vmatprep.subr.bf16.mxu0 0
        %913 = vmatpush1.bf16.msra.mxu0 0
        %914 = vmatprep.subr.bf16.mxu0 0
        %915 = vmatpush1.bf16.msra.mxu0 0
        %916 = vmatprep.mubr.bf16.mxu0 0
        %917 = vmatmul.mubr.bf16.gmra.mrb[0].mxu0 %v879
        %v918 = vpop.f32.mrb[0].mxu0
        %v919 = vadd.f32 0.0, %v918
        %v920 = vpop.f32.mrb[0].mxu0
        %v921 = vpop.f32.mrb[0].mxu0
        %v922 = vpop.f32.mrb[0].mxu0
        %923 = vdwg.mxu0
        %925 = vrot.lane.b32.xlu0 %v919, 24
        %v926 = vpop.permute.xlu0 %925
        %vm928 = vcmask 261312
        %929 = vst.msk [vmem:[#allocation2] sm:$0xff] %vm928, %v926
        %v930 = vld [vmem:[#allocation2] sm:$0xff]
        %v931 = vpack.c.bf16 %v930, %v930
        %v932 = vld [vmem:[#allocation9] sm:$0xf]
        %v933 = vld [vmem:[#allocation9 + $0x4] sm:$0xf]
        %v934 = vld [vmem:[#allocation9 + $0x8] sm:$0xf]
        %v935 = vld [vmem:[#allocation9 + $0xc] sm:$0xf]
        %v936 = vld [vmem:[%s5] sm:$0x1]
        %v938 = vlaneseq
        %v939 = vshrl.u32 %v938, 7
        %v940 = vsub.s32 0, %v939
        %v941 = vrot.slane %v936, %v940
        %v947 = vunpack.c.l.b16 %v932
        %v948 = vunpack.c.l.b16 %v933
        %v949 = vunpack.c.l.b16 %v934
        %v950 = vunpack.c.l.b16 %v935
        %v951 = vpack.c.b16 %v948, %v947
        %v952 = vpack.c.b16 %v950, %v949
        %vm955 = vcmask 261120
        %v957 = vsel %vm955, %v931, 0
        %959 = vmatprep.subr.bf16.mxu0 0
        %960 = vmatpush1.bf16.msra.mxu0 %v951
        %961 = vmatprep.subr.bf16.mxu0 0
        %962 = vmatpush1.bf16.msra.mxu0 %v952
        %963 = vmatprep.subr.bf16.mxu0 0
        %964 = vmatpush1.bf16.msra.mxu0 0
        %965 = vmatprep.subr.bf16.mxu0 0
        %966 = vmatpush1.bf16.msra.mxu0 0
        %967 = vmatprep.subr.bf16.mxu0 0
        %968 = vmatpush1.bf16.msra.mxu0 0
        %969 = vmatprep.subr.bf16.mxu0 0
        %970 = vmatpush1.bf16.msra.mxu0 0
        %971 = vmatprep.subr.bf16.mxu0 0
        %972 = vmatpush1.bf16.msra.mxu0 0
        %973 = vmatprep.subr.bf16.mxu0 0
        %974 = vmatpush1.bf16.msra.mxu0 0
        %975 = vmatprep.subr.bf16.mxu0 0
        %976 = vmatpush1.bf16.msra.mxu0 0
        %977 = vmatprep.subr.bf16.mxu0 0
        %978 = vmatpush1.bf16.msra.mxu0 0
        %979 = vmatprep.subr.bf16.mxu0 0
        %980 = vmatpush1.bf16.msra.mxu0 0
        %981 = vmatprep.subr.bf16.mxu0 0
        %982 = vmatpush1.bf16.msra.mxu0 0
        %983 = vmatprep.subr.bf16.mxu0 0
        %984 = vmatpush1.bf16.msra.mxu0 0
        %985 = vmatprep.subr.bf16.mxu0 0
        %986 = vmatpush1.bf16.msra.mxu0 0
        %987 = vmatprep.subr.bf16.mxu0 0
        %988 = vmatpush1.bf16.msra.mxu0 0
        %989 = vmatprep.subr.bf16.mxu0 0
        %990 = vmatpush1.bf16.msra.mxu0 0
        %991 = vmatprep.mubr.bf16.mxu0 0
        %992 = vmatmul.mubr.bf16.gmra.mrb[0].mxu0 %v957
        %v993 = vpop.f32.mrb[0].mxu0
        %v994 = vadd.f32 %v941, %v993
        %v995 = vpop.f32.mrb[0].mxu0
        %v996 = vpop.f32.mrb[0].mxu0
        %v997 = vpop.f32.mrb[0].mxu0
        %998 = vdwg.mxu0
        %999 = vst.msk [vmem:[%s439] sm:$0xff] %vm955, %v994
        %s1000 = sand.u32 %s204, 1
        %s1001 = scalar_lea.sflag [#allocation5], %s1000
        %s1002 = sand.u32 %s204, 1
        %s1003 = smul.addr %s1002, 16
        %s1004 = scalar_lea.vmem [#allocation11], %s1003
        %s1005 = sand.u32 %s232, 1
        %s1006 = scalar_lea.sflag [#allocation13], %s1005
        %s1007 = sand.u32 %s232, 1
        %s1008 = smul.addr %s1007, 8
        %s1009 = scalar_lea.vmem [#allocation12], %s1008
        // Predicated region
        $region61: #{tpu_custom_call.1} parent=43 // pred_check
          %p1010 = pneg %p214
        $region62: #{tpu_custom_call.1} parent=43 // pred_check_branch
          %1012 = sbr.rel (%p1010) target = $region64
        $region63: #{tpu_custom_call.1} parent=43 // pred_region
          %s1014 = ssub.s32 256, 256
          %1015 = vsyncadd %s1001, %s1014
          %s1016 = smul.addr %s36, 4
          %s1017 = sadd.s32 %s37, %s1016
          %s1018 = smul.addr %s1017, 64
          %s1019 = scalar_lea.hbm %s6, %s1018
          %s1020 = sshll.u32 %s1004, 4
          %s1021 = int_to_ptr.vmem [resolvable:$true] %s1020
          %1026 = dma.vmem_to_hbm [thread:$0]  %s1021, 256, %s1019, %s1001, 64, 64, 4
        $region64: #{tpu_custom_call.1} parent=43 // pred_fallthru
          _
        // Predicated region
        $region65: #{tpu_custom_call.1} parent=43 // pred_check
          %p1027 = pneg %p242
        $region66: #{tpu_custom_call.1} parent=43 // pred_check_branch
          %1029 = sbr.rel (%p1027) target = $region68
        $region67: #{tpu_custom_call.1} parent=43 // pred_region
          %s1031 = ssub.s32 128, 128
          %1032 = vsyncadd %s1006, %s1031
          %s1033 = sadd.s32 %s37, %s36
          %s1034 = smul.addr %s1033, 128
          %s1035 = scalar_lea.hbm %s7, %s1034
          %s1037 = sshll.u32 %s1009, 4
          %s1038 = int_to_ptr.vmem [resolvable:$true] %s1037
          %1040 = dma.vmem_to_hbm [thread:$0]  %s1038, 128, %s1035, %s1006
        $region68: #{tpu_custom_call.1} parent=43 // pred_fallthru
          _
      $region44: #{tpu_custom_call.1} parent=5 // pred_fallthru
        _
      %p1041 = scmp.le.s32.totalorder 2, %s27
      // Predicated region
      $region69: #{tpu_custom_call.1} parent=5 // pred_check
        %p1042 = pneg %p1041
      $region70: #{tpu_custom_call.1} parent=5 // pred_check_branch
        %1044 = sbr.rel (%p1042) target = $region72
      $region71: #{tpu_custom_call.1} parent=5 // pred_region
        %s1045 = ssub.s32 %s27, 2
        // Predicated region
        $region73: #{tpu_custom_call.1} parent=71 // pred_check
          %p1046 = pneg %p220
        $region74: #{tpu_custom_call.1} parent=71 // pred_check_branch
          %1048 = sbr.rel (%p1046) target = $region76
        $region75: #{tpu_custom_call.1} parent=71 // pred_region
          %s1049 = sand.u32 %s205, 1
          %s1050 = scalar_lea.sflag [#allocation5], %s1049
          %s1051 = sand.u32 %s205, 1
          %s1052 = smul.addr %s1051, 16
          %s1053 = scalar_lea.vmem [#allocation11], %s1052
          %1054 = dma.done %s1050, 256
        $region76: #{tpu_custom_call.1} parent=71 // pred_fallthru
          _
        // Predicated region
        $region77: #{tpu_custom_call.1} parent=71 // pred_check
          %p1055 = pneg %p248
        $region78: #{tpu_custom_call.1} parent=71 // pred_check_branch
          %1057 = sbr.rel (%p1055) target = $region80
        $region79: #{tpu_custom_call.1} parent=71 // pred_region
          %s1058 = sand.u32 %s233, 1
          %s1059 = scalar_lea.sflag [#allocation13], %s1058
          %s1060 = sand.u32 %s233, 1
          %s1061 = smul.addr %s1060, 8
          %s1062 = scalar_lea.vmem [#allocation12], %s1061
          %1063 = dma.done %s1059, 128
        $region80: #{tpu_custom_call.1} parent=71 // pred_fallthru
          _
      $region72: #{tpu_custom_call.1} parent=5 // pred_fallthru
        _
    $region6: #{tpu_custom_call.1} parent=1 // loop_footer
      %s31 = sadd.s32 1, %s27
    $region7: #{tpu_custom_call.1} parent=1 // loop_footer_branch
      %26 = sbr.rel target = $region3
    $region8: #{tpu_custom_call.1} parent=1 // loop_exit
      _
    %1064 = vsyncpa [#allocation4], 1
    %s1065 = scalar_lea.sflag [#allocation4], 1
    %1066 = vsyncpa %s1065, 1
    %1067 = vsyncpa [#allocation7], 1
    %s1068 = scalar_lea.sflag [#allocation7], 1
    %1069 = vsyncpa %s1068, 1
    %1070 = vsyncpa [#allocation10], 1
    %1071 = vsyncpa [#allocation5], 1
    %s1072 = scalar_lea.sflag [#allocation5], 1
    %1073 = vsyncpa %s1072, 1
    %1074 = vsyncpa [#allocation13], 1
    %s1075 = scalar_lea.sflag [#allocation13], 1
    %1076 = vsyncpa %s1075, 1

</llo_original>
